<compile_context>
chip_gen: v6e
topology: v6e:2x2x1
jax: 0.10.0
libtpu: 0.0.40
codegen_flags: <defaults>
</compile_context>

<pallas_src>
import functools

import jax
import jax.numpy as jnp
from jax import lax
from jax.experimental import pallas as pl
from jax.experimental.pallas import tpu as pltpu

NEG_BIG = -9e15


def _elu(v):
    # F.elu; exp(v)-1 kept instead of expm1 for guaranteed Mosaic lowering.
    return jnp.where(v > 0, v, jnp.exp(v) - 1.0)


def _bias_from_mask(mask_ref):
    # int8 {0,1} adjacency tile -> additive {0, -9e15} f32 bias, once per (tq, N) tile.
    return (1.0 - mask_ref[...].astype(jnp.float32)) * NEG_BIG


def _heads_attention(wh_all, wh_q, bias, a1p, a2t, *, alpha, nheads, f_out):
    """Masked multi-head attention for one query-row tile -> ELU(mean_h ELU(att @ Wh))."""
    # Attention-logit halves for all heads via two bf16 MXU contractions:
    #   wh1[:, h] = Wh_q_h @ a1_h        (tq, H)
    #   wh2[h, :] = a2_h . Wh_all_h^T    (H, N)   (already in (1, N) broadcast layout)
    wh1 = jnp.dot(wh_q, a1p, preferred_element_type=jnp.float32)
    wh2 = lax.dot_general(a2t, wh_all, (((1,), (1,)), ((), ())),
                          preferred_element_type=jnp.float32)
    tq = wh_q.shape[0]
    acc = jnp.zeros((tq, f_out), jnp.float32)
    for h in range(nheads):                               # small static head count -> unrolled
        e = wh1[:, h:h + 1] + wh2[h:h + 1, :]             # (tq, N) f32
        e = jnp.maximum(e, alpha * e) + bias              # LeakyReLU (vmax) + additive adj mask
        m = jnp.max(e, axis=1, keepdims=True)
        p = jnp.exp(e - m)
        s = jnp.sum(p, axis=1, keepdims=True)
        hp = jnp.dot(p.astype(jnp.bfloat16),              # bf16 MXU value matmul, f32 acc
                     wh_all[:, h * f_out:(h + 1) * f_out],
                     preferred_element_type=jnp.float32)
        hp = hp * pl.reciprocal(s, approx=True)           # deferred softmax norm (EUP slot)
        acc = acc + _elu(hp)                              # in-layer ELU (concat=True)
    return _elu(acc * (1.0 / nheads))                     # mean over heads + F.elu


def _proj_kernel(x_ref, wp_ref, o_ref):
    # Lane-dense projection for all heads: (tq, F_in) @ (F_in, H*F_out) -> (tq, H*F_out).
    o_ref[...] = jnp.dot(x_ref[...], wp_ref[...],
                         preferred_element_type=jnp.float32).astype(jnp.bfloat16)


def _attn_kernel(whall_ref, mask_ref, a1p_ref, a2t_ref, o_ref,
                 *, alpha, nheads, f_out, tq):
    row0 = pl.multiple_of(pl.program_id(0) * tq, tq)
    h_out = _heads_attention(whall_ref[...], whall_ref[pl.ds(row0, tq), :],
                             _bias_from_mask(mask_ref), a1p_ref[...], a2t_ref[...],
                             alpha=alpha, nheads=nheads, f_out=f_out)
    o_ref[...] = h_out                                    # (tq, f_out) f32


def _attn_proj_kernel(whall_ref, mask_ref, a1p_ref, a2t_ref, wpn_ref, o_ref,
                      *, alpha, nheads, f_out, tq):
    # Layer-l attention fused with layer-(l+1) projection: the layer output never
    # round-trips through HBM and the store is lane-dense (tq, H*F_out).
    row0 = pl.multiple_of(pl.program_id(0) * tq, tq)
    h_out = _heads_attention(whall_ref[...], whall_ref[pl.ds(row0, tq), :],
                             _bias_from_mask(mask_ref), a1p_ref[...], a2t_ref[...],
                             alpha=alpha, nheads=nheads, f_out=f_out)
    o_ref[...] = jnp.dot(h_out.astype(jnp.bfloat16), wpn_ref[...],
                         preferred_element_type=jnp.float32).astype(jnp.bfloat16)


def pack_gat_params(params):
    """Pack per-head params once at init (hoisted out of the per-call path).

    W  (H, F_in, F_out) -> wp  (F_in, H*F_out)   bf16, lane-dense
    a1 (H, 1, F_out)    -> a1p (H*F_out, H)      bf16, block-diagonal columns
    a2 (H, 1, F_out)    -> a2t (H, H*F_out)      bf16, block-diagonal rows
    """
    packed = []
    for (W, a1, a2) in params:
        nheads, f_in, f_out = W.shape
        wp = jnp.transpose(W, (1, 0, 2)).reshape(f_in, nheads * f_out)
        eye = jnp.eye(nheads, dtype=W.dtype)
        a1p = (a1.reshape(nheads, f_out, 1) * eye.reshape(nheads, 1, nheads)
               ).reshape(nheads * f_out, nheads)
        a2t = (a2.reshape(nheads, 1, f_out) * eye.reshape(nheads, nheads, 1)
               ).reshape(nheads, nheads * f_out)
        packed.append((wp.astype(jnp.bfloat16),
                       a1p.astype(jnp.bfloat16),
                       a2t.astype(jnp.bfloat16)))
    return tuple(packed)


def gat_forward(x, adj_mask, packed_params, *, alpha, row_tile=256):
    """Two stacked multi-head GAT layers. adj_mask is an int8 {0,1} adjacency matrix."""
    (wp1, a1p1, a2t1), (wp2, a1p2, a2t2) = packed_params
    n, nfeat = x.shape
    hf = wp1.shape[1]                      # nheads * nhid
    nheads = a1p1.shape[1]
    nhid = hf // nheads

    # Row tiling over query rows; keys (Wh_all, bf16) stay resident while the
    # N^2-sized adjacency streams as int8 (tq, N) tiles.
    tq = n if n <= row_tile else row_tile
    assert n % tq == 0, "row_tile must divide N"
    nt = n // tq

    cparams = pltpu.CompilerParams(
        dimension_semantics=("parallel",),             # shard row tiles across TCs (v7x)
        vmem_limit_bytes=64 * 1024 * 1024)

    x_bf = x.astype(jnp.bfloat16)

    # ---- call 1: layer-1 projection -------------------------------------------------
    wh1_all = pl.pallas_call(
        _proj_kernel,
        out_shape=jax.ShapeDtypeStruct((n, hf), jnp.bfloat16),
        grid_spec=pltpu.PrefetchScalarGridSpec(
            num_scalar_prefetch=0, grid=(nt,),
            in_specs=[pl.BlockSpec((tq, nfeat), lambda i: (i, 0)),
                      pl.BlockSpec((nfeat, hf), lambda i: (0, 0))],
            out_specs=pl.BlockSpec((tq, hf), lambda i: (i, 0))),
        compiler_params=cparams,
    )(x_bf, wp1)

    # ---- call 2: layer-1 attention + fused layer-2 projection ------------------------
    k1 = functools.partial(_attn_proj_kernel, alpha=alpha, nheads=nheads,
                           f_out=nhid, tq=tq)
    wh2_all = pl.pallas_call(
        k1,
        out_shape=jax.ShapeDtypeStruct((n, hf), jnp.bfloat16),
        grid_spec=pltpu.PrefetchScalarGridSpec(
            num_scalar_prefetch=0, grid=(nt,),
            in_specs=[pl.BlockSpec((n, hf), lambda i: (0, 0)),        # Wh1_all (resident)
                      pl.BlockSpec((tq, n), lambda i: (i, 0)),        # int8 adjacency tile
                      pl.BlockSpec((hf, nheads), lambda i: (0, 0)),   # a1 layer 1 (block-diag)
                      pl.BlockSpec((nheads, hf), lambda i: (0, 0)),   # a2 layer 1 (block-diag)
                      pl.BlockSpec((nhid, hf), lambda i: (0, 0))],    # W layer 2 (packed)
            out_specs=pl.BlockSpec((tq, hf), lambda i: (i, 0))),
        compiler_params=cparams,
    )(wh1_all, adj_mask, a1p1, a2t1, wp2)

    # ---- call 3: layer-2 attention -> final output ------------------------------------
    k2 = functools.partial(_attn_kernel, alpha=alpha, nheads=nheads,
                           f_out=nhid, tq=tq)
    return pl.pallas_call(
        k2,
        out_shape=jax.ShapeDtypeStruct((n, nhid), jnp.float32),
        grid_spec=pltpu.PrefetchScalarGridSpec(
            num_scalar_prefetch=0, grid=(nt,),
            in_specs=[pl.BlockSpec((n, hf), lambda i: (0, 0)),        # Wh2_all (resident)
                      pl.BlockSpec((tq, n), lambda i: (i, 0)),        # int8 adjacency tile
                      pl.BlockSpec((hf, nheads), lambda i: (0, 0)),   # a1 layer 2
                      pl.BlockSpec((nheads, hf), lambda i: (0, 0))],  # a2 layer 2
            out_specs=pl.BlockSpec((tq, nhid), lambda i: (i, 0))),
        compiler_params=cparams,
    )(wh2_all, adj_mask, a1p2, a2t2)


def _init_head_params(key, nheads, f_in, f_out):
    """Deterministic xavier-uniform-ish init for stacked per-head params."""
    kw, ka = jax.random.split(key)
    gain_w = jnp.sqrt(6.0 / (f_in + f_out))
    W = jax.random.uniform(kw, (nheads, f_in, f_out), jnp.float32,
                           minval=-gain_w, maxval=gain_w)
    gain_a = jnp.sqrt(6.0 / (2 * f_out + 1))
    a = jax.random.uniform(ka, (nheads, 2 * f_out, 1), jnp.float32,
                           minval=-gain_a, maxval=gain_a)
    a1 = jnp.transpose(a[:, :f_out, :], (0, 2, 1))   # (H, 1, F_out)
    a2 = jnp.transpose(a[:, f_out:, :], (0, 2, 1))   # (H, 1, F_out)
    return W, a1, a2


if __name__ == "__main__":
    # Small, deterministic problem: 16 nodes, nfeat=16, nhid=32, 4 heads.
    N, NFEAT, NHID, NHEADS = 16, 16, 32, 4
    ALPHA = 0.2  # LeakyReLU slope

    key = jax.random.PRNGKey(0)
    kx, kadj, kp1, kp2 = jax.random.split(key, 4)

    x = jax.random.normal(kx, (N, NFEAT), jnp.float32)

    # Random symmetric binary adjacency with self-loops, shipped as an int8 {0,1} mask
    # (built once, outside the forward path).
    r = jax.random.uniform(kadj, (N, N), jnp.float32)
    adj = (r + r.T > 1.0).astype(jnp.float32)
    adj = jnp.maximum(adj, jnp.eye(N, dtype=jnp.float32))
    adj_mask = (adj > 0).astype(jnp.int8)

    params = (
        _init_head_params(kp1, NHEADS, NFEAT, NHID),
        _init_head_params(kp2, NHEADS, NHID, NHID),
    )
    packed = pack_gat_params(params)   # packing hoisted out of the per-call path

    fwd = jax.jit(functools.partial(gat_forward, alpha=ALPHA))
    out = fwd(x, adj_mask, packed)
    jax.block_until_ready(out)

    assert out.shape == (N, NHID), out.shape
    assert bool(jnp.all(jnp.isfinite(out)))
    print("KERNEL_OK")
</pallas_src>

<mosaic_0001>
module attributes {stable_mosaic.version = 11 : i64} {
  func.func @_proj_kernel(%arg0: i32, %arg1: memref<16x16xbf16, #tpu.memory_space<vmem>>, %arg2: memref<16x128xbf16, #tpu.memory_space<vmem>>, %arg3: memref<16x128xbf16, #tpu.memory_space<vmem>>) attributes {dimension_semantics = [#tpu.dimension_semantics<parallel>], iteration_bounds = array<i64: 1>, scalar_prefetch = 0 : i64, scratch_operands = 0 : i64, tpu.core_type = #tpu.core_type<tc>, window_params = [{transform_indices = @transform_0, window_bounds = array<i64: 16, 16>}, {pipeline_mode = #tpu.pipeline_mode<synchronous>, transform_indices = @transform_1, window_bounds = array<i64: 16, 128>}, {transform_indices = @transform_2, window_bounds = array<i64: 16, 128>}]} {
    %c0 = arith.constant 0 : index
    %c0_0 = arith.constant 0 : index
    %0 = vector.load %arg1[%c0, %c0_0] : memref<16x16xbf16, #tpu.memory_space<vmem>>, vector<16x16xbf16>
    %c0_1 = arith.constant 0 : index
    %c0_2 = arith.constant 0 : index
    %1 = vector.load %arg2[%c0_1, %c0_2] : memref<16x128xbf16, #tpu.memory_space<vmem>>, vector<16x128xbf16>
    %cst = arith.constant dense<0.000000e+00> : vector<16x128xf32>
    %2 = tpu.matmul %0, %1, %cst {dimension_numbers = #tpu.dot_dimension_numbers<[1], [0], [0], [1], [0, 0, 1, 1], [], []>} : vector<16x16xbf16>, vector<16x128xbf16>, vector<16x128xf32> -> vector<16x128xf32>
    %3 = arith.truncf %2 : vector<16x128xf32> to vector<16x128xbf16>
    %c0_3 = arith.constant 0 : index
    %c0_4 = arith.constant 0 : index
    %4 = vector.load %arg3[%c0_3, %c0_4] : memref<16x128xbf16, #tpu.memory_space<vmem>>, vector<16x128xbf16>
    tpu.vector_store %arg3[%c0_3, %c0_4], %3 {strides = array<i32>} : memref<16x128xbf16, #tpu.memory_space<vmem>>, vector<16x128xbf16>,
    return
  }
  func.func @transform_0(%arg0: i32) -> (i32, i32) {
    %c0_i32 = arith.constant 0 : i32
    %c0_i32_0 = arith.constant 0 : i32
    return %arg0, %c0_i32 : i32, i32
  }
  func.func @transform_1(%arg0: i32) -> (i32, i32) {
    %c0_i32 = arith.constant 0 : i32
    %c0_i32_0 = arith.constant 0 : i32
    %c0_i32_1 = arith.constant 0 : i32
    return %c0_i32, %c0_i32_0 : i32, i32
  }
  func.func @transform_2(%arg0: i32) -> (i32, i32) {
    %c0_i32 = arith.constant 0 : i32
    %c0_i32_0 = arith.constant 0 : i32
    return %arg0, %c0_i32 : i32, i32
  }
}

module attributes {stable_mosaic.version = 11 : i64} {
  func.func @_attn_proj_kernel(%arg0: i32, %arg1: memref<16x128xbf16, #tpu.memory_space<vmem>>, %arg2: memref<16x16xi8, #tpu.memory_space<vmem>>, %arg3: memref<128x4xbf16, #tpu.memory_space<vmem>>, %arg4: memref<4x128xbf16, #tpu.memory_space<vmem>>, %arg5: memref<32x128xbf16, #tpu.memory_space<vmem>>, %arg6: memref<16x128xbf16, #tpu.memory_space<vmem>>) attributes {dimension_semantics = [#tpu.dimension_semantics<parallel>], iteration_bounds = array<i64: 1>, scalar_prefetch = 0 : i64, scratch_operands = 0 : i64, tpu.core_type = #tpu.core_type<tc>, window_params = [{pipeline_mode = #tpu.pipeline_mode<synchronous>, transform_indices = @transform_0, window_bounds = array<i64: 16, 128>}, {transform_indices = @transform_1, window_bounds = array<i64: 16, 16>}, {pipeline_mode = #tpu.pipeline_mode<synchronous>, transform_indices = @transform_2, window_bounds = array<i64: 128, 4>}, {pipeline_mode = #tpu.pipeline_mode<synchronous>, transform_indices = @transform_3, window_bounds = array<i64: 4, 128>}, {pipeline_mode = #tpu.pipeline_mode<synchronous>, transform_indices = @transform_4, window_bounds = array<i64: 32, 128>}, {transform_indices = @transform_5, window_bounds = array<i64: 16, 128>}]} {
    %c16_i32 = arith.constant 16 : i32
    %0 = arith.muli %arg0, %c16_i32 : i32
    %1 = tpu.assume_multiple %0, 16 : i32
    %c0 = arith.constant 0 : index
    %c0_0 = arith.constant 0 : index
    %2 = vector.load %arg1[%c0, %c0_0] : memref<16x128xbf16, #tpu.memory_space<vmem>>, vector<16x128xbf16>
    %3 = arith.index_cast %1 : i32 to index
    %c0_1 = arith.constant 0 : index
    %4 = vector.load %arg1[%3, %c0_1] : memref<16x128xbf16, #tpu.memory_space<vmem>>, vector<16x128xbf16>
    %c0_2 = arith.constant 0 : index
    %c0_3 = arith.constant 0 : index
    %5 = vector.load %arg2[%c0_2, %c0_3] : memref<16x16xi8, #tpu.memory_space<vmem>>, vector<16x16xi8>
    %6 = arith.sitofp %5 : vector<16x16xi8> to vector<16x16xf32>
    %cst = arith.constant 1.000000e+00 : f32
    %7 = vector.broadcast %cst : f32 to vector<16x16xf32>
    %8 = arith.subf %7, %6 : vector<16x16xf32>
    %cst_4 = arith.constant -9.000000e+15 : f32
    %9 = vector.broadcast %cst_4 : f32 to vector<16x16xf32>
    %10 = arith.mulf %8, %9 : vector<16x16xf32>
    %c0_5 = arith.constant 0 : index
    %c0_6 = arith.constant 0 : index
    %11 = vector.load %arg3[%c0_5, %c0_6] : memref<128x4xbf16, #tpu.memory_space<vmem>>, vector<128x4xbf16>
    %c0_7 = arith.constant 0 : index
    %c0_8 = arith.constant 0 : index
    %12 = vector.load %arg4[%c0_7, %c0_8] : memref<4x128xbf16, #tpu.memory_space<vmem>>, vector<4x128xbf16>
    %cst_9 = arith.constant dense<0.000000e+00> : vector<16x4xf32>
    %13 = tpu.matmul %4, %11, %cst_9 {dimension_numbers = #tpu.dot_dimension_numbers<[1], [0], [0], [1], [0, 0, 1, 1], [], []>} : vector<16x128xbf16>, vector<128x4xbf16>, vector<16x4xf32> -> vector<16x4xf32>
    %cst_10 = arith.constant dense<0.000000e+00> : vector<4x16xf32>
    %14 = tpu.matmul %12, %2, %cst_10 {dimension_numbers = #tpu.dot_dimension_numbers<[1], [1], [0], [0], [0, 0, 1, 0], [], []>} : vector<4x128xbf16>, vector<16x128xbf16>, vector<4x16xf32> -> vector<4x16xf32>
    %cst_11 = arith.constant 0.000000e+00 : f32
    %15 = vector.broadcast %cst_11 : f32 to vector<16x32xf32>
    %16 = vector.extract_strided_slice %13 {offsets = [0, 0], sizes = [16, 1], strides = [1, 1]} : vector<16x4xf32> to vector<16x1xf32>
    %17 = vector.extract_strided_slice %14 {offsets = [0, 0], sizes = [1, 16], strides = [1, 1]} : vector<4x16xf32> to vector<1x16xf32>
    %18 = vector.broadcast %16 : vector<16x1xf32> to vector<16x16xf32>
    %19 = vector.broadcast %17 : vector<1x16xf32> to vector<16x16xf32>
    %20 = arith.addf %18, %19 : vector<16x16xf32>
    %cst_12 = arith.constant 2.000000e-01 : f32
    %21 = vector.broadcast %cst_12 : f32 to vector<16x16xf32>
    %22 = arith.mulf %21, %20 : vector<16x16xf32>
    %23 = arith.maximumf %20, %22 : vector<16x16xf32>
    %24 = arith.addf %23, %10 : vector<16x16xf32>
    %cst_13 = arith.constant dense<0xFF800000> : vector<16xf32>
    %25 = vector.multi_reduction <maximumf>, %24, %cst_13 [1] : vector<16x16xf32> to vector<16xf32>
    %26 = vector.shape_cast %25 : vector<16xf32> to vector<16x1xf32>
    %27 = vector.broadcast %26 : vector<16x1xf32> to vector<16x16xf32>
    %28 = arith.subf %24, %27 : vector<16x16xf32>
    %29 = math.exp %28 : vector<16x16xf32>
    %cst_14 = arith.constant dense<0.000000e+00> : vector<16xf32>
    %30 = vector.multi_reduction <add>, %29, %cst_14 [1] : vector<16x16xf32> to vector<16xf32>
    %31 = vector.shape_cast %30 : vector<16xf32> to vector<16x1xf32>
    %32 = arith.truncf %29 : vector<16x16xf32> to vector<16x16xbf16>
    %33 = vector.extract_strided_slice %2 {offsets = [0, 0], sizes = [16, 32], strides = [1, 1]} : vector<16x128xbf16> to vector<16x32xbf16>
    %cst_15 = arith.constant dense<0.000000e+00> : vector<16x32xf32>
    %34 = tpu.matmul %32, %33, %cst_15 {dimension_numbers = #tpu.dot_dimension_numbers<[1], [0], [0], [1], [0, 0, 1, 1], [], []>} : vector<16x16xbf16>, vector<16x32xbf16>, vector<16x32xf32> -> vector<16x32xf32>
    %35 = tpu.reciprocal %31 {approx = true} : vector<16x1xf32> -> vector<16x1xf32>
    %36 = vector.broadcast %35 : vector<16x1xf32> to vector<16x32xf32>
    %37 = arith.mulf %34, %36 : vector<16x32xf32>
    %cst_16 = arith.constant 0.000000e+00 : f32
    %38 = vector.broadcast %cst_16 : f32 to vector<16x32xf32>
    %39 = arith.cmpf ogt, %37, %38 : vector<16x32xf32>
    %40 = math.exp %37 : vector<16x32xf32>
    %cst_17 = arith.constant 1.000000e+00 : f32
    %41 = vector.broadcast %cst_17 : f32 to vector<16x32xf32>
    %42 = arith.subf %40, %41 : vector<16x32xf32>
    %43 = arith.select %39, %37, %42 : vector<16x32xi1>, vector<16x32xf32>
    %44 = arith.addf %15, %43 : vector<16x32xf32>
    %45 = vector.extract_strided_slice %13 {offsets = [0, 1], sizes = [16, 1], strides = [1, 1]} : vector<16x4xf32> to vector<16x1xf32>
    %46 = vector.extract_strided_slice %14 {offsets = [1, 0], sizes = [1, 16], strides = [1, 1]} : vector<4x16xf32> to vector<1x16xf32>
    %47 = vector.broadcast %45 : vector<16x1xf32> to vector<16x16xf32>
    %48 = vector.broadcast %46 : vector<1x16xf32> to vector<16x16xf32>
    %49 = arith.addf %47, %48 : vector<16x16xf32>
    %cst_18 = arith.constant 2.000000e-01 : f32
    %50 = vector.broadcast %cst_18 : f32 to vector<16x16xf32>
    %51 = arith.mulf %50, %49 : vector<16x16xf32>
    %52 = arith.maximumf %49, %51 : vector<16x16xf32>
    %53 = arith.addf %52, %10 : vector<16x16xf32>
    %cst_19 = arith.constant dense<0xFF800000> : vector<16xf32>
    %54 = vector.multi_reduction <maximumf>, %53, %cst_19 [1] : vector<16x16xf32> to vector<16xf32>
    %55 = vector.shape_cast %54 : vector<16xf32> to vector<16x1xf32>
    %56 = vector.broadcast %55 : vector<16x1xf32> to vector<16x16xf32>
    %57 = arith.subf %53, %56 : vector<16x16xf32>
    %58 = math.exp %57 : vector<16x16xf32>
    %cst_20 = arith.constant dense<0.000000e+00> : vector<16xf32>
    %59 = vector.multi_reduction <add>, %58, %cst_20 [1] : vector<16x16xf32> to vector<16xf32>
    %60 = vector.shape_cast %59 : vector<16xf32> to vector<16x1xf32>
    %61 = arith.truncf %58 : vector<16x16xf32> to vector<16x16xbf16>
    %62 = vector.extract_strided_slice %2 {offsets = [0, 32], sizes = [16, 32], strides = [1, 1]} : vector<16x128xbf16> to vector<16x32xbf16>
    %cst_21 = arith.constant dense<0.000000e+00> : vector<16x32xf32>
    %63 = tpu.matmul %61, %62, %cst_21 {dimension_numbers = #tpu.dot_dimension_numbers<[1], [0], [0], [1], [0, 0, 1, 1], [], []>} : vector<16x16xbf16>, vector<16x32xbf16>, vector<16x32xf32> -> vector<16x32xf32>
    %64 = tpu.reciprocal %60 {approx = true} : vector<16x1xf32> -> vector<16x1xf32>
    %65 = vector.broadcast %64 : vector<16x1xf32> to vector<16x32xf32>
    %66 = arith.mulf %63, %65 : vector<16x32xf32>
    %cst_22 = arith.constant 0.000000e+00 : f32
    %67 = vector.broadcast %cst_22 : f32 to vector<16x32xf32>
    %68 = arith.cmpf ogt, %66, %67 : vector<16x32xf32>
    %69 = math.exp %66 : vector<16x32xf32>
    %cst_23 = arith.constant 1.000000e+00 : f32
    %70 = vector.broadcast %cst_23 : f32 to vector<16x32xf32>
    %71 = arith.subf %69, %70 : vector<16x32xf32>
    %72 = arith.select %68, %66, %71 : vector<16x32xi1>, vector<16x32xf32>
    %73 = arith.addf %44, %72 : vector<16x32xf32>
    %74 = vector.extract_strided_slice %13 {offsets = [0, 2], sizes = [16, 1], strides = [1, 1]} : vector<16x4xf32> to vector<16x1xf32>
    %75 = vector.extract_strided_slice %14 {offsets = [2, 0], sizes = [1, 16], strides = [1, 1]} : vector<4x16xf32> to vector<1x16xf32>
    %76 = vector.broadcast %74 : vector<16x1xf32> to vector<16x16xf32>
    %77 = vector.broadcast %75 : vector<1x16xf32> to vector<16x16xf32>
    %78 = arith.addf %76, %77 : vector<16x16xf32>
    %cst_24 = arith.constant 2.000000e-01 : f32
    %79 = vector.broadcast %cst_24 : f32 to vector<16x16xf32>
    %80 = arith.mulf %79, %78 : vector<16x16xf32>
    %81 = arith.maximumf %78, %80 : vector<16x16xf32>
    %82 = arith.addf %81, %10 : vector<16x16xf32>
    %cst_25 = arith.constant dense<0xFF800000> : vector<16xf32>
    %83 = vector.multi_reduction <maximumf>, %82, %cst_25 [1] : vector<16x16xf32> to vector<16xf32>
    %84 = vector.shape_cast %83 : vector<16xf32> to vector<16x1xf32>
    %85 = vector.broadcast %84 : vector<16x1xf32> to vector<16x16xf32>
    %86 = arith.subf %82, %85 : vector<16x16xf32>
    %87 = math.exp %86 : vector<16x16xf32>
    %cst_26 = arith.constant dense<0.000000e+00> : vector<16xf32>
    %88 = vector.multi_reduction <add>, %87, %cst_26 [1] : vector<16x16xf32> to vector<16xf32>
    %89 = vector.shape_cast %88 : vector<16xf32> to vector<16x1xf32>
    %90 = arith.truncf %87 : vector<16x16xf32> to vector<16x16xbf16>
    %91 = vector.extract_strided_slice %2 {offsets = [0, 64], sizes = [16, 32], strides = [1, 1]} : vector<16x128xbf16> to vector<16x32xbf16>
    %cst_27 = arith.constant dense<0.000000e+00> : vector<16x32xf32>
    %92 = tpu.matmul %90, %91, %cst_27 {dimension_numbers = #tpu.dot_dimension_numbers<[1], [0], [0], [1], [0, 0, 1, 1], [], []>} : vector<16x16xbf16>, vector<16x32xbf16>, vector<16x32xf32> -> vector<16x32xf32>
    %93 = tpu.reciprocal %89 {approx = true} : vector<16x1xf32> -> vector<16x1xf32>
    %94 = vector.broadcast %93 : vector<16x1xf32> to vector<16x32xf32>
    %95 = arith.mulf %92, %94 : vector<16x32xf32>
    %cst_28 = arith.constant 0.000000e+00 : f32
    %96 = vector.broadcast %cst_28 : f32 to vector<16x32xf32>
    %97 = arith.cmpf ogt, %95, %96 : vector<16x32xf32>
    %98 = math.exp %95 : vector<16x32xf32>
    %cst_29 = arith.constant 1.000000e+00 : f32
    %99 = vector.broadcast %cst_29 : f32 to vector<16x32xf32>
    %100 = arith.subf %98, %99 : vector<16x32xf32>
    %101 = arith.select %97, %95, %100 : vector<16x32xi1>, vector<16x32xf32>
    %102 = arith.addf %73, %101 : vector<16x32xf32>
    %103 = vector.extract_strided_slice %13 {offsets = [0, 3], sizes = [16, 1], strides = [1, 1]} : vector<16x4xf32> to vector<16x1xf32>
    %104 = vector.extract_strided_slice %14 {offsets = [3, 0], sizes = [1, 16], strides = [1, 1]} : vector<4x16xf32> to vector<1x16xf32>
    %105 = vector.broadcast %103 : vector<16x1xf32> to vector<16x16xf32>
    %106 = vector.broadcast %104 : vector<1x16xf32> to vector<16x16xf32>
    %107 = arith.addf %105, %106 : vector<16x16xf32>
    %cst_30 = arith.constant 2.000000e-01 : f32
    %108 = vector.broadcast %cst_30 : f32 to vector<16x16xf32>
    %109 = arith.mulf %108, %107 : vector<16x16xf32>
    %110 = arith.maximumf %107, %109 : vector<16x16xf32>
    %111 = arith.addf %110, %10 : vector<16x16xf32>
    %cst_31 = arith.constant dense<0xFF800000> : vector<16xf32>
    %112 = vector.multi_reduction <maximumf>, %111, %cst_31 [1] : vector<16x16xf32> to vector<16xf32>
    %113 = vector.shape_cast %112 : vector<16xf32> to vector<16x1xf32>
    %114 = vector.broadcast %113 : vector<16x1xf32> to vector<16x16xf32>
    %115 = arith.subf %111, %114 : vector<16x16xf32>
    %116 = math.exp %115 : vector<16x16xf32>
    %cst_32 = arith.constant dense<0.000000e+00> : vector<16xf32>
    %117 = vector.multi_reduction <add>, %116, %cst_32 [1] : vector<16x16xf32> to vector<16xf32>
    %118 = vector.shape_cast %117 : vector<16xf32> to vector<16x1xf32>
    %119 = arith.truncf %116 : vector<16x16xf32> to vector<16x16xbf16>
    %120 = vector.extract_strided_slice %2 {offsets = [0, 96], sizes = [16, 32], strides = [1, 1]} : vector<16x128xbf16> to vector<16x32xbf16>
    %cst_33 = arith.constant dense<0.000000e+00> : vector<16x32xf32>
    %121 = tpu.matmul %119, %120, %cst_33 {dimension_numbers = #tpu.dot_dimension_numbers<[1], [0], [0], [1], [0, 0, 1, 1], [], []>} : vector<16x16xbf16>, vector<16x32xbf16>, vector<16x32xf32> -> vector<16x32xf32>
    %122 = tpu.reciprocal %118 {approx = true} : vector<16x1xf32> -> vector<16x1xf32>
    %123 = vector.broadcast %122 : vector<16x1xf32> to vector<16x32xf32>
    %124 = arith.mulf %121, %123 : vector<16x32xf32>
    %cst_34 = arith.constant 0.000000e+00 : f32
    %125 = vector.broadcast %cst_34 : f32 to vector<16x32xf32>
    %126 = arith.cmpf ogt, %124, %125 : vector<16x32xf32>
    %127 = math.exp %124 : vector<16x32xf32>
    %cst_35 = arith.constant 1.000000e+00 : f32
    %128 = vector.broadcast %cst_35 : f32 to vector<16x32xf32>
    %129 = arith.subf %127, %128 : vector<16x32xf32>
    %130 = arith.select %126, %124, %129 : vector<16x32xi1>, vector<16x32xf32>
    %131 = arith.addf %102, %130 : vector<16x32xf32>
    %cst_36 = arith.constant 2.500000e-01 : f32
    %132 = vector.broadcast %cst_36 : f32 to vector<16x32xf32>
    %133 = arith.mulf %131, %132 : vector<16x32xf32>
    %cst_37 = arith.constant 0.000000e+00 : f32
    %134 = vector.broadcast %cst_37 : f32 to vector<16x32xf32>
    %135 = arith.cmpf ogt, %133, %134 : vector<16x32xf32>
    %136 = math.exp %133 : vector<16x32xf32>
    %cst_38 = arith.constant 1.000000e+00 : f32
    %137 = vector.broadcast %cst_38 : f32 to vector<16x32xf32>
    %138 = arith.subf %136, %137 : vector<16x32xf32>
    %139 = arith.select %135, %133, %138 : vector<16x32xi1>, vector<16x32xf32>
    %140 = arith.truncf %139 : vector<16x32xf32> to vector<16x32xbf16>
    %c0_39 = arith.constant 0 : index
    %c0_40 = arith.constant 0 : index
    %141 = vector.load %arg5[%c0_39, %c0_40] : memref<32x128xbf16, #tpu.memory_space<vmem>>, vector<32x128xbf16>
    %cst_41 = arith.constant dense<0.000000e+00> : vector<16x128xf32>
    %142 = tpu.matmul %140, %141, %cst_41 {dimension_numbers = #tpu.dot_dimension_numbers<[1], [0], [0], [1], [0, 0, 1, 1], [], []>} : vector<16x32xbf16>, vector<32x128xbf16>, vector<16x128xf32> -> vector<16x128xf32>
    %143 = arith.truncf %142 : vector<16x128xf32> to vector<16x128xbf16>
    %c0_42 = arith.constant 0 : index
    %c0_43 = arith.constant 0 : index
    %144 = vector.load %arg6[%c0_42, %c0_43] : memref<16x128xbf16, #tpu.memory_space<vmem>>, vector<16x128xbf16>
    tpu.vector_store %arg6[%c0_42, %c0_43], %143 {strides = array<i32>} : memref<16x128xbf16, #tpu.memory_space<vmem>>, vector<16x128xbf16>,
    return
  }
  func.func @transform_0(%arg0: i32) -> (i32, i32) {
    %c0_i32 = arith.constant 0 : i32
    %c0_i32_0 = arith.constant 0 : i32
    %c0_i32_1 = arith.constant 0 : i32
    return %c0_i32, %c0_i32_0 : i32, i32
  }
  func.func @transform_1(%arg0: i32) -> (i32, i32) {
    %c0_i32 = arith.constant 0 : i32
    %c0_i32_0 = arith.constant 0 : i32
    return %arg0, %c0_i32 : i32, i32
  }
  func.func @transform_2(%arg0: i32) -> (i32, i32) {
    %c0_i32 = arith.constant 0 : i32
    %c0_i32_0 = arith.constant 0 : i32
    %c0_i32_1 = arith.constant 0 : i32
    return %c0_i32, %c0_i32_0 : i32, i32
  }
  func.func @transform_3(%arg0: i32) -> (i32, i32) {
    %c0_i32 = arith.constant 0 : i32
    %c0_i32_0 = arith.constant 0 : i32
    %c0_i32_1 = arith.constant 0 : i32
    return %c0_i32, %c0_i32_0 : i32, i32
  }
  func.func @transform_4(%arg0: i32) -> (i32, i32) {
    %c0_i32 = arith.constant 0 : i32
    %c0_i32_0 = arith.constant 0 : i32
    %c0_i32_1 = arith.constant 0 : i32
    return %c0_i32, %c0_i32_0 : i32, i32
  }
  func.func @transform_5(%arg0: i32) -> (i32, i32) {
    %c0_i32 = arith.constant 0 : i32
    %c0_i32_0 = arith.constant 0 : i32
    return %arg0, %c0_i32 : i32, i32
  }
}

module attributes {stable_mosaic.version = 11 : i64} {
  func.func @_attn_kernel(%arg0: i32, %arg1: memref<16x128xbf16, #tpu.memory_space<vmem>>, %arg2: memref<16x16xi8, #tpu.memory_space<vmem>>, %arg3: memref<128x4xbf16, #tpu.memory_space<vmem>>, %arg4: memref<4x128xbf16, #tpu.memory_space<vmem>>, %arg5: memref<16x32xf32, #tpu.memory_space<vmem>>) attributes {dimension_semantics = [#tpu.dimension_semantics<parallel>], iteration_bounds = array<i64: 1>, scalar_prefetch = 0 : i64, scratch_operands = 0 : i64, tpu.core_type = #tpu.core_type<tc>, window_params = [{pipeline_mode = #tpu.pipeline_mode<synchronous>, transform_indices = @transform_0, window_bounds = array<i64: 16, 128>}, {transform_indices = @transform_1, window_bounds = array<i64: 16, 16>}, {pipeline_mode = #tpu.pipeline_mode<synchronous>, transform_indices = @transform_2, window_bounds = array<i64: 128, 4>}, {pipeline_mode = #tpu.pipeline_mode<synchronous>, transform_indices = @transform_3, window_bounds = array<i64: 4, 128>}, {transform_indices = @transform_4, window_bounds = array<i64: 16, 32>}]} {
    %c16_i32 = arith.constant 16 : i32
    %0 = arith.muli %arg0, %c16_i32 : i32
    %1 = tpu.assume_multiple %0, 16 : i32
    %c0 = arith.constant 0 : index
    %c0_0 = arith.constant 0 : index
    %2 = vector.load %arg1[%c0, %c0_0] : memref<16x128xbf16, #tpu.memory_space<vmem>>, vector<16x128xbf16>
    %3 = arith.index_cast %1 : i32 to index
    %c0_1 = arith.constant 0 : index
    %4 = vector.load %arg1[%3, %c0_1] : memref<16x128xbf16, #tpu.memory_space<vmem>>, vector<16x128xbf16>
    %c0_2 = arith.constant 0 : index
    %c0_3 = arith.constant 0 : index
    %5 = vector.load %arg2[%c0_2, %c0_3] : memref<16x16xi8, #tpu.memory_space<vmem>>, vector<16x16xi8>
    %6 = arith.sitofp %5 : vector<16x16xi8> to vector<16x16xf32>
    %cst = arith.constant 1.000000e+00 : f32
    %7 = vector.broadcast %cst : f32 to vector<16x16xf32>
    %8 = arith.subf %7, %6 : vector<16x16xf32>
    %cst_4 = arith.constant -9.000000e+15 : f32
    %9 = vector.broadcast %cst_4 : f32 to vector<16x16xf32>
    %10 = arith.mulf %8, %9 : vector<16x16xf32>
    %c0_5 = arith.constant 0 : index
    %c0_6 = arith.constant 0 : index
    %11 = vector.load %arg3[%c0_5, %c0_6] : memref<128x4xbf16, #tpu.memory_space<vmem>>, vector<128x4xbf16>
    %c0_7 = arith.constant 0 : index
    %c0_8 = arith.constant 0 : index
    %12 = vector.load %arg4[%c0_7, %c0_8] : memref<4x128xbf16, #tpu.memory_space<vmem>>, vector<4x128xbf16>
    %cst_9 = arith.constant dense<0.000000e+00> : vector<16x4xf32>
    %13 = tpu.matmul %4, %11, %cst_9 {dimension_numbers = #tpu.dot_dimension_numbers<[1], [0], [0], [1], [0, 0, 1, 1], [], []>} : vector<16x128xbf16>, vector<128x4xbf16>, vector<16x4xf32> -> vector<16x4xf32>
    %cst_10 = arith.constant dense<0.000000e+00> : vector<4x16xf32>
    %14 = tpu.matmul %12, %2, %cst_10 {dimension_numbers = #tpu.dot_dimension_numbers<[1], [1], [0], [0], [0, 0, 1, 0], [], []>} : vector<4x128xbf16>, vector<16x128xbf16>, vector<4x16xf32> -> vector<4x16xf32>
    %cst_11 = arith.constant 0.000000e+00 : f32
    %15 = vector.broadcast %cst_11 : f32 to vector<16x32xf32>
    %16 = vector.extract_strided_slice %13 {offsets = [0, 0], sizes = [16, 1], strides = [1, 1]} : vector<16x4xf32> to vector<16x1xf32>
    %17 = vector.extract_strided_slice %14 {offsets = [0, 0], sizes = [1, 16], strides = [1, 1]} : vector<4x16xf32> to vector<1x16xf32>
    %18 = vector.broadcast %16 : vector<16x1xf32> to vector<16x16xf32>
    %19 = vector.broadcast %17 : vector<1x16xf32> to vector<16x16xf32>
    %20 = arith.addf %18, %19 : vector<16x16xf32>
    %cst_12 = arith.constant 2.000000e-01 : f32
    %21 = vector.broadcast %cst_12 : f32 to vector<16x16xf32>
    %22 = arith.mulf %21, %20 : vector<16x16xf32>
    %23 = arith.maximumf %20, %22 : vector<16x16xf32>
    %24 = arith.addf %23, %10 : vector<16x16xf32>
    %cst_13 = arith.constant dense<0xFF800000> : vector<16xf32>
    %25 = vector.multi_reduction <maximumf>, %24, %cst_13 [1] : vector<16x16xf32> to vector<16xf32>
    %26 = vector.shape_cast %25 : vector<16xf32> to vector<16x1xf32>
    %27 = vector.broadcast %26 : vector<16x1xf32> to vector<16x16xf32>
    %28 = arith.subf %24, %27 : vector<16x16xf32>
    %29 = math.exp %28 : vector<16x16xf32>
    %cst_14 = arith.constant dense<0.000000e+00> : vector<16xf32>
    %30 = vector.multi_reduction <add>, %29, %cst_14 [1] : vector<16x16xf32> to vector<16xf32>
    %31 = vector.shape_cast %30 : vector<16xf32> to vector<16x1xf32>
    %32 = arith.truncf %29 : vector<16x16xf32> to vector<16x16xbf16>
    %33 = vector.extract_strided_slice %2 {offsets = [0, 0], sizes = [16, 32], strides = [1, 1]} : vector<16x128xbf16> to vector<16x32xbf16>
    %cst_15 = arith.constant dense<0.000000e+00> : vector<16x32xf32>
    %34 = tpu.matmul %32, %33, %cst_15 {dimension_numbers = #tpu.dot_dimension_numbers<[1], [0], [0], [1], [0, 0, 1, 1], [], []>} : vector<16x16xbf16>, vector<16x32xbf16>, vector<16x32xf32> -> vector<16x32xf32>
    %35 = tpu.reciprocal %31 {approx = true} : vector<16x1xf32> -> vector<16x1xf32>
    %36 = vector.broadcast %35 : vector<16x1xf32> to vector<16x32xf32>
    %37 = arith.mulf %34, %36 : vector<16x32xf32>
    %cst_16 = arith.constant 0.000000e+00 : f32
    %38 = vector.broadcast %cst_16 : f32 to vector<16x32xf32>
    %39 = arith.cmpf ogt, %37, %38 : vector<16x32xf32>
    %40 = math.exp %37 : vector<16x32xf32>
    %cst_17 = arith.constant 1.000000e+00 : f32
    %41 = vector.broadcast %cst_17 : f32 to vector<16x32xf32>
    %42 = arith.subf %40, %41 : vector<16x32xf32>
    %43 = arith.select %39, %37, %42 : vector<16x32xi1>, vector<16x32xf32>
    %44 = arith.addf %15, %43 : vector<16x32xf32>
    %45 = vector.extract_strided_slice %13 {offsets = [0, 1], sizes = [16, 1], strides = [1, 1]} : vector<16x4xf32> to vector<16x1xf32>
    %46 = vector.extract_strided_slice %14 {offsets = [1, 0], sizes = [1, 16], strides = [1, 1]} : vector<4x16xf32> to vector<1x16xf32>
    %47 = vector.broadcast %45 : vector<16x1xf32> to vector<16x16xf32>
    %48 = vector.broadcast %46 : vector<1x16xf32> to vector<16x16xf32>
    %49 = arith.addf %47, %48 : vector<16x16xf32>
    %cst_18 = arith.constant 2.000000e-01 : f32
    %50 = vector.broadcast %cst_18 : f32 to vector<16x16xf32>
    %51 = arith.mulf %50, %49 : vector<16x16xf32>
    %52 = arith.maximumf %49, %51 : vector<16x16xf32>
    %53 = arith.addf %52, %10 : vector<16x16xf32>
    %cst_19 = arith.constant dense<0xFF800000> : vector<16xf32>
    %54 = vector.multi_reduction <maximumf>, %53, %cst_19 [1] : vector<16x16xf32> to vector<16xf32>
    %55 = vector.shape_cast %54 : vector<16xf32> to vector<16x1xf32>
    %56 = vector.broadcast %55 : vector<16x1xf32> to vector<16x16xf32>
    %57 = arith.subf %53, %56 : vector<16x16xf32>
    %58 = math.exp %57 : vector<16x16xf32>
    %cst_20 = arith.constant dense<0.000000e+00> : vector<16xf32>
    %59 = vector.multi_reduction <add>, %58, %cst_20 [1] : vector<16x16xf32> to vector<16xf32>
    %60 = vector.shape_cast %59 : vector<16xf32> to vector<16x1xf32>
    %61 = arith.truncf %58 : vector<16x16xf32> to vector<16x16xbf16>
    %62 = vector.extract_strided_slice %2 {offsets = [0, 32], sizes = [16, 32], strides = [1, 1]} : vector<16x128xbf16> to vector<16x32xbf16>
    %cst_21 = arith.constant dense<0.000000e+00> : vector<16x32xf32>
    %63 = tpu.matmul %61, %62, %cst_21 {dimension_numbers = #tpu.dot_dimension_numbers<[1], [0], [0], [1], [0, 0, 1, 1], [], []>} : vector<16x16xbf16>, vector<16x32xbf16>, vector<16x32xf32> -> vector<16x32xf32>
    %64 = tpu.reciprocal %60 {approx = true} : vector<16x1xf32> -> vector<16x1xf32>
    %65 = vector.broadcast %64 : vector<16x1xf32> to vector<16x32xf32>
    %66 = arith.mulf %63, %65 : vector<16x32xf32>
    %cst_22 = arith.constant 0.000000e+00 : f32
    %67 = vector.broadcast %cst_22 : f32 to vector<16x32xf32>
    %68 = arith.cmpf ogt, %66, %67 : vector<16x32xf32>
    %69 = math.exp %66 : vector<16x32xf32>
    %cst_23 = arith.constant 1.000000e+00 : f32
    %70 = vector.broadcast %cst_23 : f32 to vector<16x32xf32>
    %71 = arith.subf %69, %70 : vector<16x32xf32>
    %72 = arith.select %68, %66, %71 : vector<16x32xi1>, vector<16x32xf32>
    %73 = arith.addf %44, %72 : vector<16x32xf32>
    %74 = vector.extract_strided_slice %13 {offsets = [0, 2], sizes = [16, 1], strides = [1, 1]} : vector<16x4xf32> to vector<16x1xf32>
    %75 = vector.extract_strided_slice %14 {offsets = [2, 0], sizes = [1, 16], strides = [1, 1]} : vector<4x16xf32> to vector<1x16xf32>
    %76 = vector.broadcast %74 : vector<16x1xf32> to vector<16x16xf32>
    %77 = vector.broadcast %75 : vector<1x16xf32> to vector<16x16xf32>
    %78 = arith.addf %76, %77 : vector<16x16xf32>
    %cst_24 = arith.constant 2.000000e-01 : f32
    %79 = vector.broadcast %cst_24 : f32 to vector<16x16xf32>
    %80 = arith.mulf %79, %78 : vector<16x16xf32>
    %81 = arith.maximumf %78, %80 : vector<16x16xf32>
    %82 = arith.addf %81, %10 : vector<16x16xf32>
    %cst_25 = arith.constant dense<0xFF800000> : vector<16xf32>
    %83 = vector.multi_reduction <maximumf>, %82, %cst_25 [1] : vector<16x16xf32> to vector<16xf32>
    %84 = vector.shape_cast %83 : vector<16xf32> to vector<16x1xf32>
    %85 = vector.broadcast %84 : vector<16x1xf32> to vector<16x16xf32>
    %86 = arith.subf %82, %85 : vector<16x16xf32>
    %87 = math.exp %86 : vector<16x16xf32>
    %cst_26 = arith.constant dense<0.000000e+00> : vector<16xf32>
    %88 = vector.multi_reduction <add>, %87, %cst_26 [1] : vector<16x16xf32> to vector<16xf32>
    %89 = vector.shape_cast %88 : vector<16xf32> to vector<16x1xf32>
    %90 = arith.truncf %87 : vector<16x16xf32> to vector<16x16xbf16>
    %91 = vector.extract_strided_slice %2 {offsets = [0, 64], sizes = [16, 32], strides = [1, 1]} : vector<16x128xbf16> to vector<16x32xbf16>
    %cst_27 = arith.constant dense<0.000000e+00> : vector<16x32xf32>
    %92 = tpu.matmul %90, %91, %cst_27 {dimension_numbers = #tpu.dot_dimension_numbers<[1], [0], [0], [1], [0, 0, 1, 1], [], []>} : vector<16x16xbf16>, vector<16x32xbf16>, vector<16x32xf32> -> vector<16x32xf32>
    %93 = tpu.reciprocal %89 {approx = true} : vector<16x1xf32> -> vector<16x1xf32>
    %94 = vector.broadcast %93 : vector<16x1xf32> to vector<16x32xf32>
    %95 = arith.mulf %92, %94 : vector<16x32xf32>
    %cst_28 = arith.constant 0.000000e+00 : f32
    %96 = vector.broadcast %cst_28 : f32 to vector<16x32xf32>
    %97 = arith.cmpf ogt, %95, %96 : vector<16x32xf32>
    %98 = math.exp %95 : vector<16x32xf32>
    %cst_29 = arith.constant 1.000000e+00 : f32
    %99 = vector.broadcast %cst_29 : f32 to vector<16x32xf32>
    %100 = arith.subf %98, %99 : vector<16x32xf32>
    %101 = arith.select %97, %95, %100 : vector<16x32xi1>, vector<16x32xf32>
    %102 = arith.addf %73, %101 : vector<16x32xf32>
    %103 = vector.extract_strided_slice %13 {offsets = [0, 3], sizes = [16, 1], strides = [1, 1]} : vector<16x4xf32> to vector<16x1xf32>
    %104 = vector.extract_strided_slice %14 {offsets = [3, 0], sizes = [1, 16], strides = [1, 1]} : vector<4x16xf32> to vector<1x16xf32>
    %105 = vector.broadcast %103 : vector<16x1xf32> to vector<16x16xf32>
    %106 = vector.broadcast %104 : vector<1x16xf32> to vector<16x16xf32>
    %107 = arith.addf %105, %106 : vector<16x16xf32>
    %cst_30 = arith.constant 2.000000e-01 : f32
    %108 = vector.broadcast %cst_30 : f32 to vector<16x16xf32>
    %109 = arith.mulf %108, %107 : vector<16x16xf32>
    %110 = arith.maximumf %107, %109 : vector<16x16xf32>
    %111 = arith.addf %110, %10 : vector<16x16xf32>
    %cst_31 = arith.constant dense<0xFF800000> : vector<16xf32>
    %112 = vector.multi_reduction <maximumf>, %111, %cst_31 [1] : vector<16x16xf32> to vector<16xf32>
    %113 = vector.shape_cast %112 : vector<16xf32> to vector<16x1xf32>
    %114 = vector.broadcast %113 : vector<16x1xf32> to vector<16x16xf32>
    %115 = arith.subf %111, %114 : vector<16x16xf32>
    %116 = math.exp %115 : vector<16x16xf32>
    %cst_32 = arith.constant dense<0.000000e+00> : vector<16xf32>
    %117 = vector.multi_reduction <add>, %116, %cst_32 [1] : vector<16x16xf32> to vector<16xf32>
    %118 = vector.shape_cast %117 : vector<16xf32> to vector<16x1xf32>
    %119 = arith.truncf %116 : vector<16x16xf32> to vector<16x16xbf16>
    %120 = vector.extract_strided_slice %2 {offsets = [0, 96], sizes = [16, 32], strides = [1, 1]} : vector<16x128xbf16> to vector<16x32xbf16>
    %cst_33 = arith.constant dense<0.000000e+00> : vector<16x32xf32>
    %121 = tpu.matmul %119, %120, %cst_33 {dimension_numbers = #tpu.dot_dimension_numbers<[1], [0], [0], [1], [0, 0, 1, 1], [], []>} : vector<16x16xbf16>, vector<16x32xbf16>, vector<16x32xf32> -> vector<16x32xf32>
    %122 = tpu.reciprocal %118 {approx = true} : vector<16x1xf32> -> vector<16x1xf32>
    %123 = vector.broadcast %122 : vector<16x1xf32> to vector<16x32xf32>
    %124 = arith.mulf %121, %123 : vector<16x32xf32>
    %cst_34 = arith.constant 0.000000e+00 : f32
    %125 = vector.broadcast %cst_34 : f32 to vector<16x32xf32>
    %126 = arith.cmpf ogt, %124, %125 : vector<16x32xf32>
    %127 = math.exp %124 : vector<16x32xf32>
    %cst_35 = arith.constant 1.000000e+00 : f32
    %128 = vector.broadcast %cst_35 : f32 to vector<16x32xf32>
    %129 = arith.subf %127, %128 : vector<16x32xf32>
    %130 = arith.select %126, %124, %129 : vector<16x32xi1>, vector<16x32xf32>
    %131 = arith.addf %102, %130 : vector<16x32xf32>
    %cst_36 = arith.constant 2.500000e-01 : f32
    %132 = vector.broadcast %cst_36 : f32 to vector<16x32xf32>
    %133 = arith.mulf %131, %132 : vector<16x32xf32>
    %cst_37 = arith.constant 0.000000e+00 : f32
    %134 = vector.broadcast %cst_37 : f32 to vector<16x32xf32>
    %135 = arith.cmpf ogt, %133, %134 : vector<16x32xf32>
    %136 = math.exp %133 : vector<16x32xf32>
    %cst_38 = arith.constant 1.000000e+00 : f32
    %137 = vector.broadcast %cst_38 : f32 to vector<16x32xf32>
    %138 = arith.subf %136, %137 : vector<16x32xf32>
    %139 = arith.select %135, %133, %138 : vector<16x32xi1>, vector<16x32xf32>
    %c0_39 = arith.constant 0 : index
    %c0_40 = arith.constant 0 : index
    %140 = vector.load %arg5[%c0_39, %c0_40] : memref<16x32xf32, #tpu.memory_space<vmem>>, vector<16x32xf32>
    tpu.vector_store %arg5[%c0_39, %c0_40], %139 {strides = array<i32>} : memref<16x32xf32, #tpu.memory_space<vmem>>, vector<16x32xf32>,
    return
  }
  func.func @transform_0(%arg0: i32) -> (i32, i32) {
    %c0_i32 = arith.constant 0 : i32
    %c0_i32_0 = arith.constant 0 : i32
    %c0_i32_1 = arith.constant 0 : i32
    return %c0_i32, %c0_i32_0 : i32, i32
  }
  func.func @transform_1(%arg0: i32) -> (i32, i32) {
    %c0_i32 = arith.constant 0 : i32
    %c0_i32_0 = arith.constant 0 : i32
    return %arg0, %c0_i32 : i32, i32
  }
  func.func @transform_2(%arg0: i32) -> (i32, i32) {
    %c0_i32 = arith.constant 0 : i32
    %c0_i32_0 = arith.constant 0 : i32
    %c0_i32_1 = arith.constant 0 : i32
    return %c0_i32, %c0_i32_0 : i32, i32
  }
  func.func @transform_3(%arg0: i32) -> (i32, i32) {
    %c0_i32 = arith.constant 0 : i32
    %c0_i32_0 = arith.constant 0 : i32
    %c0_i32_1 = arith.constant 0 : i32
    return %c0_i32, %c0_i32_0 : i32, i32
  }
  func.func @transform_4(%arg0: i32) -> (i32, i32) {
    %c0_i32 = arith.constant 0 : i32
    %c0_i32_0 = arith.constant 0 : i32
    return %arg0, %c0_i32 : i32, i32
  }
}

</mosaic_0001>

<llo_original>
// kernel: gat_forward.3
$region0: #{gat_forward.3}
  #allocation0 [shape = 'u32[]', space=smem, size = 0x4, offset = 0x4, fixed_abs, tag = 'smem constant byte address 0x4 - core index']
  #allocation1 [shape = 'u32[144,128]{1,0:T(1,128)}', space=vmem, size = 0x12000, scoped, tag = 'internal scratch']
  %s0 = inlined_call_operand.vmem [shape: bf16[16,16], index: 0, kind: input, shape index: {}]
  %s1 = inlined_call_operand.vmem [shape: bf16[16,128], index: 1, kind: input, shape index: {}]
  %s2 = inlined_call_operand.vmem [shape: bf16[16,128], index: 2, kind: output, shape index: {}]
  %s3 = sld [smem:[#allocation0]]
  $region18: #{gat_forward.3} parent=0
    _
  %s5 = ssub.s32 1, %s3
  %s6 = scalar_select 0, %s5, %s3
  // Predicated region
  $region2: #{gat_forward.3} parent=0 // pred_check
    _
  $region3: #{gat_forward.3} parent=0 // pred_check_branch
    %8 = sbr.rel (0) target = $region5
  $region4: #{gat_forward.3} parent=0 // pred_region
    _
  $region5: #{gat_forward.3} parent=0 // pred_fallthru
    _
  // Predicated region
  $region6: #{gat_forward.3} parent=0 // pred_check
    _
  $region7: #{gat_forward.3} parent=0 // pred_check_branch
    %10 = sbr.rel (0) target = $region9
  $region8: #{gat_forward.3} parent=0 // pred_region
    _
  $region9: #{gat_forward.3} parent=0 // pred_fallthru
    _
  %v12 = vld [vmem:[%s0] sm:$0xf]
  %v13 = vld [vmem:[%s0 + $0x4] sm:$0xf]
  %v14 = vld [vmem:[%s1] sm:$0xf]
  %v15 = vld [vmem:[%s1 + $0x4] sm:$0xf]
  %v18 = vunpack.c.l.b16 %v12
  %v19 = vunpack.c.l.b16 %v13
  %v20 = vpack.c.b16 %v19, %v18
  %v23 = vunpack.c.l.b16 %v14
  %v24 = vunpack.c.l.b16 %v15
  %v25 = vpack.c.b16 %v24, %v23
  %vm27 = vcmask 130048
  %v29 = vsel %vm27, %v20, 0
  %31 = vmatprep.subr.bf16.mxu0 0
  %32 = vmatpush1.bf16.msra.mxu0 0
  %33 = vmatprep.subr.bf16.mxu0 0
  %34 = vmatpush1.bf16.msra.mxu0 0
  %35 = vmatprep.subr.bf16.mxu0 0
  %36 = vmatpush1.bf16.msra.mxu0 0
  %37 = vmatprep.subr.bf16.mxu0 0
  %38 = vmatpush1.bf16.msra.mxu0 0
  %39 = vmatprep.subr.bf16.mxu0 0
  %40 = vmatpush1.bf16.msra.mxu0 0
  %41 = vmatprep.subr.bf16.mxu0 0
  %42 = vmatpush1.bf16.msra.mxu0 0
  %43 = vmatprep.subr.bf16.mxu0 0
  %44 = vmatpush1.bf16.msra.mxu0 0
  %45 = vmatprep.subr.bf16.mxu0 0
  %46 = vmatpush1.bf16.msra.mxu0 %v25
  %47 = vmatprep.subr.bf16.mxu0 0
  %48 = vmatpush2.bf16.msra.mxu0 0
  %49 = vmatprep.subr.bf16.mxu0 0
  %50 = vmatpush2.bf16.msra.mxu0 0
  %51 = vmatprep.subr.bf16.mxu0 0
  %52 = vmatpush2.bf16.msra.mxu0 0
  %53 = vmatprep.subr.bf16.mxu0 0
  %54 = vmatpush2.bf16.msra.mxu0 0
  %55 = vmatprep.subr.bf16.mxu0 0
  %56 = vmatpush2.bf16.msra.mxu0 0
  %57 = vmatprep.subr.bf16.mxu0 0
  %58 = vmatpush2.bf16.msra.mxu0 0
  %59 = vmatprep.subr.bf16.mxu0 0
  %60 = vmatpush2.bf16.msra.mxu0 0
  %61 = vmatprep.subr.bf16.mxu0 0
  %62 = vmatpush2.bf16.msra.mxu0 0
  %63 = vmatprep.mubr.bf16.mxu0 0
  %64 = vmatmul.mubr.bf16.gmra.mxu0 %v29
  %v65 = vpop.f32.mrf.mxu0
  %v66 = vadd.f32 0.0, %v65
  %v67 = vpop.f32.mrf.mxu0
  %v68 = vpop.f32.mrf.mxu0
  %v69 = vadd.f32 0.0, %v68
  %v70 = vpop.f32.mrf.mxu0
  %71 = vdwg.mxu0
  %v72 = vpack.c.bf16 %v69, %v66
  %v74 = vunpack.c.l.b16 %v72
  %v75 = vunpack.c.h.b16 %v72
  %v76 = vpack.c.b16 %v74, %v74
  %v77 = vpack.c.b16 %v75, %v75
  %80 = vst [vmem:[%s2] sm:$0xf] %v76
  %81 = vst [vmem:[%s2 + $0x4] sm:$0xf] %v77
  // Predicated region
  $region10: #{gat_forward.3} parent=0 // pred_check
    _
  $region11: #{gat_forward.3} parent=0 // pred_check_branch
    %83 = sbr.rel (0) target = $region13
  $region12: #{gat_forward.3} parent=0 // pred_region
    _
  $region13: #{gat_forward.3} parent=0 // pred_fallthru
    _
  // Predicated region
  $region14: #{gat_forward.3} parent=0 // pred_check
    _
  $region15: #{gat_forward.3} parent=0 // pred_check_branch
    %85 = sbr.rel (0) target = $region17
  $region16: #{gat_forward.3} parent=0 // pred_region
    _
  $region17: #{gat_forward.3} parent=0 // pred_fallthru
    _

// kernel: gat_forward.4
$region0: #{gat_forward.4}
  #allocation0 [shape = 'u32[]', space=smem, size = 0x4, offset = 0x4, fixed_abs, tag = 'smem constant byte address 0x4 - core index']
  #allocation1 [shape = 'u32[144,128]{1,0:T(1,128)}', space=vmem, size = 0x12000, scoped, tag = 'internal scratch']
  %s0 = inlined_call_operand.vmem [shape: bf16[16,128], index: 0, kind: input, shape index: {}]
  %s1 = inlined_call_operand.vmem [shape: s8[16,16], index: 1, kind: input, shape index: {}]
  %s2 = inlined_call_operand.vmem [shape: bf16[128,4], index: 2, kind: input, shape index: {}]
  %s3 = inlined_call_operand.vmem [shape: bf16[4,128], index: 3, kind: input, shape index: {}]
  %s4 = inlined_call_operand.vmem [shape: bf16[32,128], index: 4, kind: input, shape index: {}]
  %s5 = inlined_call_operand.vmem [shape: bf16[16,128], index: 5, kind: output, shape index: {}]
  %s6 = sld [smem:[#allocation0]]
  $region30: #{gat_forward.4} parent=0
    _
  %s8 = ssub.s32 1, %s6
  %s9 = scalar_select 0, %s8, %s6
  // Predicated region
  $region2: #{gat_forward.4} parent=0 // pred_check
    _
  $region3: #{gat_forward.4} parent=0 // pred_check_branch
    %11 = sbr.rel (0) target = $region5
  $region4: #{gat_forward.4} parent=0 // pred_region
    _
  $region5: #{gat_forward.4} parent=0 // pred_fallthru
    _
  // Predicated region
  $region6: #{gat_forward.4} parent=0 // pred_check
    _
  $region7: #{gat_forward.4} parent=0 // pred_check_branch
    %13 = sbr.rel (0) target = $region9
  $region8: #{gat_forward.4} parent=0 // pred_region
    _
  $region9: #{gat_forward.4} parent=0 // pred_fallthru
    _
  // Predicated region
  $region10: #{gat_forward.4} parent=0 // pred_check
    _
  $region11: #{gat_forward.4} parent=0 // pred_check_branch
    %15 = sbr.rel (0) target = $region13
  $region12: #{gat_forward.4} parent=0 // pred_region
    _
  $region13: #{gat_forward.4} parent=0 // pred_fallthru
    _
  // Predicated region
  $region14: #{gat_forward.4} parent=0 // pred_check
    _
  $region15: #{gat_forward.4} parent=0 // pred_check_branch
    %17 = sbr.rel (0) target = $region17
  $region16: #{gat_forward.4} parent=0 // pred_region
    _
  $region17: #{gat_forward.4} parent=0 // pred_fallthru
    _
  // Predicated region
  $region18: #{gat_forward.4} parent=0 // pred_check
    _
  $region19: #{gat_forward.4} parent=0 // pred_check_branch
    %19 = sbr.rel (0) target = $region21
  $region20: #{gat_forward.4} parent=0 // pred_region
    _
  $region21: #{gat_forward.4} parent=0 // pred_fallthru
    _
  %s21 = smul.u32 0, 16
  %v22 = vld [vmem:[%s0] sm:$0xf]
  %v23 = vld [vmem:[%s0 + $0x4] sm:$0xf]
  %s24 = sshra.s32 %s21, 3
  %s25 = sand.u32 %s21, 7
  %s26 = smul.addr %s24, 4
  %s27 = scalar_lea.vmem %s0, %s26
  %v28 = vld [vmem:[%s27] sm:$0xf]
  %v29 = vld [vmem:[%s27 + $0x4] sm:$0xf]
  %v30 = vld [vmem:[%s1] sm:$0x3]
  %v31 = vld [vmem:[%s1 + $0x2] sm:$0x3]
  %v32 = vunpack.c.0.s8 %v30
  %v33 = vunpack.c.0.s8 %v31
  %v34 = vcvt.s32.f32 %v32
  %v35 = vcvt.s32.f32 %v33
  %v36 = vsub.f32 1.0, %v34
  %v37 = vsub.f32 1.0, %v35
  %v38 = vmul.f32 %v36, -9e+15
  %v39 = vmul.f32 %v37, -9e+15
  %v40 = vld [vmem:[%s2] sm:$0xf]
  %v41 = vld [vmem:[%s2 + $0x4] sm:$0xf]
  %v42 = vld [vmem:[%s2 + $0x8] sm:$0xf]
  %v43 = vld [vmem:[%s2 + $0xc] sm:$0xf]
  %v44 = vld [vmem:[%s2 + $0x10] sm:$0xf]
  %v45 = vld [vmem:[%s2 + $0x14] sm:$0xf]
  %v46 = vld [vmem:[%s2 + $0x18] sm:$0xf]
  %v47 = vld [vmem:[%s2 + $0x1c] sm:$0xf]
  %v48 = vld [vmem:[%s2 + $0x20] sm:$0xf]
  %v49 = vld [vmem:[%s2 + $0x24] sm:$0xf]
  %v50 = vld [vmem:[%s2 + $0x28] sm:$0xf]
  %v51 = vld [vmem:[%s2 + $0x2c] sm:$0xf]
  %v52 = vld [vmem:[%s2 + $0x30] sm:$0xf]
  %v53 = vld [vmem:[%s2 + $0x34] sm:$0xf]
  %v54 = vld [vmem:[%s2 + $0x38] sm:$0xf]
  %v55 = vld [vmem:[%s2 + $0x3c] sm:$0xf]
  %v56 = vld [vmem:[%s3] sm:$0x3]
  %v59 = vunpack.c.l.b16 %v28
  %v60 = vunpack.c.l.b16 %v29
  %v61 = vpack.c.b16 %v60, %v59
  %v79 = vunpack.c.l.b16 %v40
  %v80 = vunpack.c.l.b16 %v41
  %v81 = vunpack.c.l.b16 %v42
  %v82 = vunpack.c.l.b16 %v43
  %v83 = vunpack.c.l.b16 %v44
  %v84 = vunpack.c.l.b16 %v45
  %v85 = vunpack.c.l.b16 %v46
  %v86 = vunpack.c.l.b16 %v47
  %v87 = vunpack.c.l.b16 %v48
  %v88 = vunpack.c.l.b16 %v49
  %v89 = vunpack.c.l.b16 %v50
  %v90 = vunpack.c.l.b16 %v51
  %v91 = vunpack.c.l.b16 %v52
  %v92 = vunpack.c.l.b16 %v53
  %v93 = vunpack.c.l.b16 %v54
  %v94 = vunpack.c.l.b16 %v55
  %v95 = vpack.c.b16 %v80, %v79
  %v96 = vpack.c.b16 %v82, %v81
  %v97 = vpack.c.b16 %v84, %v83
  %v98 = vpack.c.b16 %v86, %v85
  %v99 = vpack.c.b16 %v88, %v87
  %v100 = vpack.c.b16 %v90, %v89
  %v101 = vpack.c.b16 %v92, %v91
  %v102 = vpack.c.b16 %v94, %v93
  %111 = vmatprep.subr.bf16.mxu0 0
  %112 = vmatpush1.bf16.msra.mxu0 %v102
  %113 = vmatprep.subr.bf16.mxu0 0
  %114 = vmatpush1.bf16.msra.mxu0 %v101
  %115 = vmatprep.subr.bf16.mxu0 0
  %116 = vmatpush1.bf16.msra.mxu0 %v100
  %117 = vmatprep.subr.bf16.mxu0 0
  %118 = vmatpush1.bf16.msra.mxu0 %v99
  %119 = vmatprep.subr.bf16.mxu0 0
  %120 = vmatpush1.bf16.msra.mxu0 %v98
  %121 = vmatprep.subr.bf16.mxu0 0
  %122 = vmatpush1.bf16.msra.mxu0 %v97
  %123 = vmatprep.subr.bf16.mxu0 0
  %124 = vmatpush1.bf16.msra.mxu0 %v96
  %125 = vmatprep.subr.bf16.mxu0 0
  %126 = vmatpush1.bf16.msra.mxu0 %v95
  %127 = vmatprep.subr.bf16.mxu0 0
  %128 = vmatpush2.bf16.msra.mxu0 0
  %129 = vmatprep.subr.bf16.mxu0 0
  %130 = vmatpush2.bf16.msra.mxu0 0
  %131 = vmatprep.subr.bf16.mxu0 0
  %132 = vmatpush2.bf16.msra.mxu0 0
  %133 = vmatprep.subr.bf16.mxu0 0
  %134 = vmatpush2.bf16.msra.mxu0 0
  %135 = vmatprep.subr.bf16.mxu0 0
  %136 = vmatpush2.bf16.msra.mxu0 0
  %137 = vmatprep.subr.bf16.mxu0 0
  %138 = vmatpush2.bf16.msra.mxu0 0
  %139 = vmatprep.subr.bf16.mxu0 0
  %140 = vmatpush2.bf16.msra.mxu0 0
  %141 = vmatprep.subr.bf16.mxu0 0
  %142 = vmatpush2.bf16.msra.mxu0 0
  %143 = vmatprep.mubr.bf16.mxu0 0
  %144 = vmatmul.mubr.bf16.gmra.mxu0 %v61
  %v145 = vpop.f32.mrf.mxu0
  %v146 = vadd.f32 0.0, %v145
  %v147 = vpop.f32.mrf.mxu0
  %v148 = vpop.f32.mrf.mxu0
  %v149 = vadd.f32 0.0, %v148
  %v150 = vpop.f32.mrf.mxu0
  %151 = vdwg.mxu0
  %v154 = vunpack.c.l.b16 %v22
  %v155 = vunpack.c.l.b16 %v23
  %v156 = vpack.c.b16 %v155, %v154
  %158 = vmatprep.subr.bf16.mxu0 0
  %159 = vmatpush1.bf16.xpose.msra.mxu0 0
  %160 = vmatprep.subr.bf16.mxu0 0
  %161 = vmatpush1.bf16.xpose.msra.mxu0 0
  %162 = vmatprep.subr.bf16.mxu0 0
  %163 = vmatpush1.bf16.xpose.msra.mxu0 0
  %164 = vmatprep.subr.bf16.mxu0 0
  %165 = vmatpush1.bf16.xpose.msra.mxu0 0
  %166 = vmatprep.subr.bf16.mxu0 0
  %167 = vmatpush1.bf16.xpose.msra.mxu0 0
  %168 = vmatprep.subr.bf16.mxu0 0
  %169 = vmatpush1.bf16.xpose.msra.mxu0 0
  %170 = vmatprep.subr.bf16.mxu0 0
  %171 = vmatpush1.bf16.xpose.msra.mxu0 0
  %172 = vmatprep.subr.bf16.mxu0 0
  %173 = vmatpush1.bf16.xpose.msra.mxu0 %v156
  %174 = vmatprep.subr.bf16.mxu0 0
  %175 = vmatpush2.bf16.xpose.msra.mxu0 0
  %176 = vmatprep.subr.bf16.mxu0 0
  %177 = vmatpush2.bf16.xpose.msra.mxu0 0
  %178 = vmatprep.subr.bf16.mxu0 0
  %179 = vmatpush2.bf16.xpose.msra.mxu0 0
  %180 = vmatprep.subr.bf16.mxu0 0
  %181 = vmatpush2.bf16.xpose.msra.mxu0 0
  %182 = vmatprep.subr.bf16.mxu0 0
  %183 = vmatpush2.bf16.xpose.msra.mxu0 0
  %184 = vmatprep.subr.bf16.mxu0 0
  %185 = vmatpush2.bf16.xpose.msra.mxu0 0
  %186 = vmatprep.subr.bf16.mxu0 0
  %187 = vmatpush2.bf16.xpose.msra.mxu0 0
  %188 = vmatprep.subr.bf16.mxu0 0
  %189 = vmatpush2.bf16.xpose.msra.mxu0 0
  %190 = vmatprep.mubr.bf16.mxu0 0
  %191 = vmatmul.mubr.bf16.gmra.mxu0 %v56
  %v192 = vpop.f32.mrf.mxu0
  %v193 = vadd.f32 0.0, %v192
  %v194 = vpop.f32.mrf.mxu0
  %v195 = vpop.f32.mrf.mxu0
  %v196 = vpop.f32.mrf.mxu0
  %197 = vdwg.mxu0
  %199 = vset.pattern.permute.xlu0 0
  %200 = vperm.xlu0 %199, %v146
  %v201 = vpop.permute.xlu0 %200
  %204 = vset.pattern.permute.xlu0 0
  %205 = vperm.xlu0 %204, %v149
  %v206 = vpop.permute.xlu0 %205
  %v208 = vlaneseq
  %v209 = vshrl.u32 %v208, 7
  %v210 = vsub.s32 0, %v209
  %v211 = vrot.slane %v193, %v210
  %v212 = vadd.f32 %v201, %v211
  %v213 = vadd.f32 %v206, %v211
  %v214 = vmul.f32 %v212, 0.2
  %v215 = vmul.f32 %v213, 0.2
  %v216 = vmax.f32 %v212, %v214
  %v217 = vmax.f32 %v213, %v215
  %v218 = vadd.f32 %v216, %v38
  %v219 = vadd.f32 %v217, %v39
  %vm220 = vcmask 130048
  %v221 = vsel %vm220, %v218, -inf
  %222 = vmax.xlane.f32.xlu0 %v221
  %v223 = vpop.xlane.xlu0 %222
  %v224 = vsel %vm220, %v219, -inf
  %225 = vmax.xlane.f32.xlu0 %v224
  %v226 = vpop.xlane.xlu0 %225
  %v227 = vsub.f32 %v218, %v223
  %v228 = vsub.f32 %v219, %v226
  %v229 = vmul.f32 %v227, 1.442695
  %v230 = vpow.pop %v229
  %v231 = vmul.f32 %v228, 1.442695
  %v232 = vpow.pop %v231
  %v233 = vsel %vm220, %v230, 0.0
  %234 = vadd.xlane.f32.xlu0 %v233
  %v235 = vpop.xlane.xlu0 %234
  %v236 = vsel %vm220, %v232, 0.0
  %237 = vadd.xlane.f32.xlu0 %v236
  %v238 = vpop.xlane.xlu0 %237
  %v239 = vpack.c.bf16 %v232, %v230
  %v241 = vsel %vm220, %v239, 0
  %243 = vmatprep.subr.bf16.mxu0 0
  %244 = vmatpush1.bf16.msra.mxu0 0
  %245 = vmatprep.subr.bf16.mxu0 0
  %246 = vmatpush1.bf16.msra.mxu0 0
  %247 = vmatprep.subr.bf16.mxu0 0
  %248 = vmatpush1.bf16.msra.mxu0 0
  %249 = vmatprep.subr.bf16.mxu0 0
  %250 = vmatpush1.bf16.msra.mxu0 0
  %251 = vmatprep.subr.bf16.mxu0 0
  %252 = vmatpush1.bf16.msra.mxu0 0
  %253 = vmatprep.subr.bf16.mxu0 0
  %254 = vmatpush1.bf16.msra.mxu0 0
  %255 = vmatprep.subr.bf16.mxu0 0
  %256 = vmatpush1.bf16.msra.mxu0 0
  %257 = vmatprep.subr.bf16.mxu0 0
  %258 = vmatpush1.bf16.msra.mxu0 %v156
  %259 = vmatprep.subr.bf16.mxu0 0
  %260 = vmatpush2.bf16.msra.mxu0 0
  %261 = vmatprep.subr.bf16.mxu0 0
  %262 = vmatpush2.bf16.msra.mxu0 0
  %263 = vmatprep.subr.bf16.mxu0 0
  %264 = vmatpush2.bf16.msra.mxu0 0
  %265 = vmatprep.subr.bf16.mxu0 0
  %266 = vmatpush2.bf16.msra.mxu0 0
  %267 = vmatprep.subr.bf16.mxu0 0
  %268 = vmatpush2.bf16.msra.mxu0 0
  %269 = vmatprep.subr.bf16.mxu0 0
  %270 = vmatpush2.bf16.msra.mxu0 0
  %271 = vmatprep.subr.bf16.mxu0 0
  %272 = vmatpush2.bf16.msra.mxu0 0
  %273 = vmatprep.subr.bf16.mxu0 0
  %274 = vmatpush2.bf16.msra.mxu0 0
  %275 = vmatprep.mubr.bf16.mxu0 0
  %276 = vmatmul.mubr.bf16.gmra.mxu0 %v241
  %v277 = vpop.f32.mrf.mxu0
  %v278 = vadd.f32 0.0, %v277
  %v279 = vpop.f32.mrf.mxu0
  %v280 = vpop.f32.mrf.mxu0
  %v281 = vadd.f32 0.0, %v280
  %v282 = vpop.f32.mrf.mxu0
  %283 = vdwg.mxu0
  %v284 = vrcp.pop %v235
  %v285 = vrcp.pop %v238
  %v286 = vmul.f32 %v278, %v284
  %v287 = vmul.f32 %v281, %v285
  %vm288 = vcmp.gt.f32.partialorder %v286, 0.0
  %vm289 = vcmp.gt.f32.partialorder %v287, 0.0
  %v290 = vmul.f32 %v286, 1.442695
  %v291 = vpow.pop %v290
  %v292 = vmul.f32 %v287, 1.442695
  %v293 = vpow.pop %v292
  %v294 = vsub.f32 %v291, 1.0
  %v295 = vsub.f32 %v293, 1.0
  %v296 = vsel %vm288, %v286, %v294
  %v297 = vsel %vm289, %v287, %v295
  %v298 = vadd.f32 %v296, 0.0
  %v299 = vadd.f32 %v297, 0.0
  %300 = vset.pattern.permute.xlu0 1
  %301 = vperm.xlu0 %300, %v146
  %v302 = vpop.permute.xlu0 %301
  %304 = vset.pattern.permute.xlu0 1
  %305 = vperm.xlu0 %304, %v149
  %v306 = vpop.permute.xlu0 %305
  %v308 = vlaneseq
  %v309 = vshrl.u32 %v308, 7
  %v310 = vsub.s32 1, %v309
  %v311 = vrot.slane %v193, %v310
  %v312 = vadd.f32 %v302, %v311
  %v313 = vadd.f32 %v306, %v311
  %v314 = vmul.f32 %v312, 0.2
  %v315 = vmul.f32 %v313, 0.2
  %v316 = vmax.f32 %v312, %v314
  %v317 = vmax.f32 %v313, %v315
  %v318 = vadd.f32 %v316, %v38
  %v319 = vadd.f32 %v317, %v39
  %v320 = vsel %vm220, %v318, -inf
  %321 = vmax.xlane.f32.xlu0 %v320
  %v322 = vpop.xlane.xlu0 %321
  %v323 = vsel %vm220, %v319, -inf
  %324 = vmax.xlane.f32.xlu0 %v323
  %v325 = vpop.xlane.xlu0 %324
  %v326 = vsub.f32 %v318, %v322
  %v327 = vsub.f32 %v319, %v325
  %v328 = vmul.f32 %v326, 1.442695
  %v329 = vpow.pop %v328
  %v330 = vmul.f32 %v327, 1.442695
  %v331 = vpow.pop %v330
  %v332 = vsel %vm220, %v329, 0.0
  %333 = vadd.xlane.f32.xlu0 %v332
  %v334 = vpop.xlane.xlu0 %333
  %v335 = vsel %vm220, %v331, 0.0
  %336 = vadd.xlane.f32.xlu0 %v335
  %v337 = vpop.xlane.xlu0 %336
  %v338 = vpack.c.bf16 %v331, %v329
  %339 = vrot.lane.b32.xlu0 %v156, 96
  %v340 = vpop.permute.xlu0 %339
  %v343 = vsel %vm220, %v338, 0
  %345 = vmatprep.subr.bf16.mxu0 0
  %346 = vmatpush1.bf16.msra.mxu0 0
  %347 = vmatprep.subr.bf16.mxu0 0
  %348 = vmatpush1.bf16.msra.mxu0 0
  %349 = vmatprep.subr.bf16.mxu0 0
  %350 = vmatpush1.bf16.msra.mxu0 0
  %351 = vmatprep.subr.bf16.mxu0 0
  %352 = vmatpush1.bf16.msra.mxu0 0
  %353 = vmatprep.subr.bf16.mxu0 0
  %354 = vmatpush1.bf16.msra.mxu0 0
  %355 = vmatprep.subr.bf16.mxu0 0
  %356 = vmatpush1.bf16.msra.mxu0 0
  %357 = vmatprep.subr.bf16.mxu0 0
  %358 = vmatpush1.bf16.msra.mxu0 0
  %359 = vmatprep.subr.bf16.mxu0 0
  %360 = vmatpush1.bf16.msra.mxu0 %v340
  %361 = vmatprep.subr.bf16.mxu0 0
  %362 = vmatpush2.bf16.msra.mxu0 0
  %363 = vmatprep.subr.bf16.mxu0 0
  %364 = vmatpush2.bf16.msra.mxu0 0
  %365 = vmatprep.subr.bf16.mxu0 0
  %366 = vmatpush2.bf16.msra.mxu0 0
  %367 = vmatprep.subr.bf16.mxu0 0
  %368 = vmatpush2.bf16.msra.mxu0 0
  %369 = vmatprep.subr.bf16.mxu0 0
  %370 = vmatpush2.bf16.msra.mxu0 0
  %371 = vmatprep.subr.bf16.mxu0 0
  %372 = vmatpush2.bf16.msra.mxu0 0
  %373 = vmatprep.subr.bf16.mxu0 0
  %374 = vmatpush2.bf16.msra.mxu0 0
  %375 = vmatprep.subr.bf16.mxu0 0
  %376 = vmatpush2.bf16.msra.mxu0 0
  %377 = vmatprep.mubr.bf16.mxu0 0
  %378 = vmatmul.mubr.bf16.gmra.mxu0 %v343
  %v379 = vpop.f32.mrf.mxu0
  %v380 = vadd.f32 0.0, %v379
  %v381 = vpop.f32.mrf.mxu0
  %v382 = vpop.f32.mrf.mxu0
  %v383 = vadd.f32 0.0, %v382
  %v384 = vpop.f32.mrf.mxu0
  %385 = vdwg.mxu0
  %v386 = vrcp.pop %v334
  %v387 = vrcp.pop %v337
  %v388 = vmul.f32 %v380, %v386
  %v389 = vmul.f32 %v383, %v387
  %vm390 = vcmp.gt.f32.partialorder %v388, 0.0
  %vm391 = vcmp.gt.f32.partialorder %v389, 0.0
  %v392 = vmul.f32 %v388, 1.442695
  %v393 = vpow.pop %v392
  %v394 = vmul.f32 %v389, 1.442695
  %v395 = vpow.pop %v394
  %v396 = vsub.f32 %v393, 1.0
  %v397 = vsub.f32 %v395, 1.0
  %v398 = vsel %vm390, %v388, %v396
  %v399 = vsel %vm391, %v389, %v397
  %v400 = vadd.f32 %v298, %v398
  %v401 = vadd.f32 %v299, %v399
  %402 = vset.pattern.permute.xlu0 2
  %403 = vperm.xlu0 %402, %v146
  %v404 = vpop.permute.xlu0 %403
  %406 = vset.pattern.permute.xlu0 2
  %407 = vperm.xlu0 %406, %v149
  %v408 = vpop.permute.xlu0 %407
  %v410 = vlaneseq
  %v411 = vshrl.u32 %v410, 7
  %v412 = vsub.s32 2, %v411
  %v413 = vrot.slane %v193, %v412
  %v414 = vadd.f32 %v404, %v413
  %v415 = vadd.f32 %v408, %v413
  %v416 = vmul.f32 %v414, 0.2
  %v417 = vmul.f32 %v415, 0.2
  %v418 = vmax.f32 %v414, %v416
  %v419 = vmax.f32 %v415, %v417
  %v420 = vadd.f32 %v418, %v38
  %v421 = vadd.f32 %v419, %v39
  %v422 = vsel %vm220, %v420, -inf
  %423 = vmax.xlane.f32.xlu0 %v422
  %v424 = vpop.xlane.xlu0 %423
  %v425 = vsel %vm220, %v421, -inf
  %426 = vmax.xlane.f32.xlu0 %v425
  %v427 = vpop.xlane.xlu0 %426
  %v428 = vsub.f32 %v420, %v424
  %v429 = vsub.f32 %v421, %v427
  %v430 = vmul.f32 %v428, 1.442695
  %v431 = vpow.pop %v430
  %v432 = vmul.f32 %v429, 1.442695
  %v433 = vpow.pop %v432
  %v434 = vsel %vm220, %v431, 0.0
  %435 = vadd.xlane.f32.xlu0 %v434
  %v436 = vpop.xlane.xlu0 %435
  %v437 = vsel %vm220, %v433, 0.0
  %438 = vadd.xlane.f32.xlu0 %v437
  %v439 = vpop.xlane.xlu0 %438
  %v440 = vpack.c.bf16 %v433, %v431
  %441 = vrot.lane.b32.xlu0 %v156, 64
  %v442 = vpop.permute.xlu0 %441
  %v445 = vsel %vm220, %v440, 0
  %447 = vmatprep.subr.bf16.mxu0 0
  %448 = vmatpush1.bf16.msra.mxu0 0
  %449 = vmatprep.subr.bf16.mxu0 0
  %450 = vmatpush1.bf16.msra.mxu0 0
  %451 = vmatprep.subr.bf16.mxu0 0
  %452 = vmatpush1.bf16.msra.mxu0 0
  %453 = vmatprep.subr.bf16.mxu0 0
  %454 = vmatpush1.bf16.msra.mxu0 0
  %455 = vmatprep.subr.bf16.mxu0 0
  %456 = vmatpush1.bf16.msra.mxu0 0
  %457 = vmatprep.subr.bf16.mxu0 0
  %458 = vmatpush1.bf16.msra.mxu0 0
  %459 = vmatprep.subr.bf16.mxu0 0
  %460 = vmatpush1.bf16.msra.mxu0 0
  %461 = vmatprep.subr.bf16.mxu0 0
  %462 = vmatpush1.bf16.msra.mxu0 %v442
  %463 = vmatprep.subr.bf16.mxu0 0
  %464 = vmatpush2.bf16.msra.mxu0 0
  %465 = vmatprep.subr.bf16.mxu0 0
  %466 = vmatpush2.bf16.msra.mxu0 0
  %467 = vmatprep.subr.bf16.mxu0 0
  %468 = vmatpush2.bf16.msra.mxu0 0
  %469 = vmatprep.subr.bf16.mxu0 0
  %470 = vmatpush2.bf16.msra.mxu0 0
  %471 = vmatprep.subr.bf16.mxu0 0
  %472 = vmatpush2.bf16.msra.mxu0 0
  %473 = vmatprep.subr.bf16.mxu0 0
  %474 = vmatpush2.bf16.msra.mxu0 0
  %475 = vmatprep.subr.bf16.mxu0 0
  %476 = vmatpush2.bf16.msra.mxu0 0
  %477 = vmatprep.subr.bf16.mxu0 0
  %478 = vmatpush2.bf16.msra.mxu0 0
  %479 = vmatprep.mubr.bf16.mxu0 0
  %480 = vmatmul.mubr.bf16.gmra.mxu0 %v445
  %v481 = vpop.f32.mrf.mxu0
  %v482 = vadd.f32 0.0, %v481
  %v483 = vpop.f32.mrf.mxu0
  %v484 = vpop.f32.mrf.mxu0
  %v485 = vadd.f32 0.0, %v484
  %v486 = vpop.f32.mrf.mxu0
  %487 = vdwg.mxu0
  %v488 = vrcp.pop %v436
  %v489 = vrcp.pop %v439
  %v490 = vmul.f32 %v482, %v488
  %v491 = vmul.f32 %v485, %v489
  %vm492 = vcmp.gt.f32.partialorder %v490, 0.0
  %vm493 = vcmp.gt.f32.partialorder %v491, 0.0
  %v494 = vmul.f32 %v490, 1.442695
  %v495 = vpow.pop %v494
  %v496 = vmul.f32 %v491, 1.442695
  %v497 = vpow.pop %v496
  %v498 = vsub.f32 %v495, 1.0
  %v499 = vsub.f32 %v497, 1.0
  %v500 = vsel %vm492, %v490, %v498
  %v501 = vsel %vm493, %v491, %v499
  %v502 = vadd.f32 %v400, %v500
  %v503 = vadd.f32 %v401, %v501
  %504 = vset.pattern.permute.xlu0 3
  %505 = vperm.xlu0 %504, %v146
  %v506 = vpop.permute.xlu0 %505
  %508 = vset.pattern.permute.xlu0 3
  %509 = vperm.xlu0 %508, %v149
  %v510 = vpop.permute.xlu0 %509
  %v512 = vlaneseq
  %v513 = vshrl.u32 %v512, 7
  %v514 = vsub.s32 3, %v513
  %v515 = vrot.slane %v193, %v514
  %v516 = vadd.f32 %v506, %v515
  %v517 = vadd.f32 %v510, %v515
  %v518 = vmul.f32 %v516, 0.2
  %v519 = vmul.f32 %v517, 0.2
  %v520 = vmax.f32 %v516, %v518
  %v521 = vmax.f32 %v517, %v519
  %v522 = vadd.f32 %v520, %v38
  %v523 = vadd.f32 %v521, %v39
  %v524 = vsel %vm220, %v522, -inf
  %525 = vmax.xlane.f32.xlu0 %v524
  %v526 = vpop.xlane.xlu0 %525
  %v527 = vsel %vm220, %v523, -inf
  %528 = vmax.xlane.f32.xlu0 %v527
  %v529 = vpop.xlane.xlu0 %528
  %v530 = vsub.f32 %v522, %v526
  %v531 = vsub.f32 %v523, %v529
  %v532 = vmul.f32 %v530, 1.442695
  %v533 = vpow.pop %v532
  %v534 = vmul.f32 %v531, 1.442695
  %v535 = vpow.pop %v534
  %v536 = vsel %vm220, %v533, 0.0
  %537 = vadd.xlane.f32.xlu0 %v536
  %v538 = vpop.xlane.xlu0 %537
  %v539 = vsel %vm220, %v535, 0.0
  %540 = vadd.xlane.f32.xlu0 %v539
  %v541 = vpop.xlane.xlu0 %540
  %v542 = vpack.c.bf16 %v535, %v533
  %543 = vrot.lane.b32.xlu0 %v156, 32
  %v544 = vpop.permute.xlu0 %543
  %v547 = vsel %vm220, %v542, 0
  %549 = vmatprep.subr.bf16.mxu0 0
  %550 = vmatpush1.bf16.msra.mxu0 0
  %551 = vmatprep.subr.bf16.mxu0 0
  %552 = vmatpush1.bf16.msra.mxu0 0
  %553 = vmatprep.subr.bf16.mxu0 0
  %554 = vmatpush1.bf16.msra.mxu0 0
  %555 = vmatprep.subr.bf16.mxu0 0
  %556 = vmatpush1.bf16.msra.mxu0 0
  %557 = vmatprep.subr.bf16.mxu0 0
  %558 = vmatpush1.bf16.msra.mxu0 0
  %559 = vmatprep.subr.bf16.mxu0 0
  %560 = vmatpush1.bf16.msra.mxu0 0
  %561 = vmatprep.subr.bf16.mxu0 0
  %562 = vmatpush1.bf16.msra.mxu0 0
  %563 = vmatprep.subr.bf16.mxu0 0
  %564 = vmatpush1.bf16.msra.mxu0 %v544
  %565 = vmatprep.subr.bf16.mxu0 0
  %566 = vmatpush2.bf16.msra.mxu0 0
  %567 = vmatprep.subr.bf16.mxu0 0
  %568 = vmatpush2.bf16.msra.mxu0 0
  %569 = vmatprep.subr.bf16.mxu0 0
  %570 = vmatpush2.bf16.msra.mxu0 0
  %571 = vmatprep.subr.bf16.mxu0 0
  %572 = vmatpush2.bf16.msra.mxu0 0
  %573 = vmatprep.subr.bf16.mxu0 0
  %574 = vmatpush2.bf16.msra.mxu0 0
  %575 = vmatprep.subr.bf16.mxu0 0
  %576 = vmatpush2.bf16.msra.mxu0 0
  %577 = vmatprep.subr.bf16.mxu0 0
  %578 = vmatpush2.bf16.msra.mxu0 0
  %579 = vmatprep.subr.bf16.mxu0 0
  %580 = vmatpush2.bf16.msra.mxu0 0
  %581 = vmatprep.mubr.bf16.mxu0 0
  %582 = vmatmul.mubr.bf16.gmra.mxu0 %v547
  %v583 = vpop.f32.mrf.mxu0
  %v584 = vadd.f32 0.0, %v583
  %v585 = vpop.f32.mrf.mxu0
  %v586 = vpop.f32.mrf.mxu0
  %v587 = vadd.f32 0.0, %v586
  %v588 = vpop.f32.mrf.mxu0
  %589 = vdwg.mxu0
  %v590 = vrcp.pop %v538
  %v591 = vrcp.pop %v541
  %v592 = vmul.f32 %v584, %v590
  %v593 = vmul.f32 %v587, %v591
  %vm594 = vcmp.gt.f32.partialorder %v592, 0.0
  %vm595 = vcmp.gt.f32.partialorder %v593, 0.0
  %v596 = vmul.f32 %v592, 1.442695
  %v597 = vpow.pop %v596
  %v598 = vmul.f32 %v593, 1.442695
  %v599 = vpow.pop %v598
  %v600 = vsub.f32 %v597, 1.0
  %v601 = vsub.f32 %v599, 1.0
  %v602 = vsel %vm594, %v592, %v600
  %v603 = vsel %vm595, %v593, %v601
  %v604 = vadd.f32 %v502, %v602
  %v605 = vadd.f32 %v503, %v603
  %v606 = vmul.f32 %v604, 0.25
  %v607 = vmul.f32 %v605, 0.25
  %vm608 = vcmp.gt.f32.partialorder %v606, 0.0
  %vm609 = vcmp.gt.f32.partialorder %v607, 0.0
  %v610 = vmul.f32 %v606, 1.442695
  %v611 = vpow.pop %v610
  %v612 = vmul.f32 %v607, 1.442695
  %v613 = vpow.pop %v612
  %v614 = vsub.f32 %v611, 1.0
  %v615 = vsub.f32 %v613, 1.0
  %v616 = vsel %vm608, %v606, %v614
  %v617 = vsel %vm609, %v607, %v615
  %v618 = vpack.c.bf16 %v617, %v616
  %v619 = vld [vmem:[%s4] sm:$0xf]
  %v620 = vld [vmem:[%s4 + $0x4] sm:$0xf]
  %v621 = vld [vmem:[%s4 + $0x8] sm:$0xf]
  %v622 = vld [vmem:[%s4 + $0xc] sm:$0xf]
  %v627 = vunpack.c.l.b16 %v619
  %v628 = vunpack.c.l.b16 %v620
  %v629 = vunpack.c.l.b16 %v621
  %v630 = vunpack.c.l.b16 %v622
  %v631 = vpack.c.b16 %v628, %v627
  %v632 = vpack.c.b16 %v630, %v629
  %vm635 = vcmask 261120
  %v637 = vsel %vm635, %v618, 0
  %639 = vmatprep.subr.bf16.mxu0 0
  %640 = vmatpush1.bf16.msra.mxu0 0
  %641 = vmatprep.subr.bf16.mxu0 0
  %642 = vmatpush1.bf16.msra.mxu0 0
  %643 = vmatprep.subr.bf16.mxu0 0
  %644 = vmatpush1.bf16.msra.mxu0 0
  %645 = vmatprep.subr.bf16.mxu0 0
  %646 = vmatpush1.bf16.msra.mxu0 0
  %647 = vmatprep.subr.bf16.mxu0 0
  %648 = vmatpush1.bf16.msra.mxu0 0
  %649 = vmatprep.subr.bf16.mxu0 0
  %650 = vmatpush1.bf16.msra.mxu0 0
  %651 = vmatprep.subr.bf16.mxu0 0
  %652 = vmatpush1.bf16.msra.mxu0 %v632
  %653 = vmatprep.subr.bf16.mxu0 0
  %654 = vmatpush1.bf16.msra.mxu0 %v631
  %655 = vmatprep.subr.bf16.mxu0 0
  %656 = vmatpush2.bf16.msra.mxu0 0
  %657 = vmatprep.subr.bf16.mxu0 0
  %658 = vmatpush2.bf16.msra.mxu0 0
  %659 = vmatprep.subr.bf16.mxu0 0
  %660 = vmatpush2.bf16.msra.mxu0 0
  %661 = vmatprep.subr.bf16.mxu0 0
  %662 = vmatpush2.bf16.msra.mxu0 0
  %663 = vmatprep.subr.bf16.mxu0 0
  %664 = vmatpush2.bf16.msra.mxu0 0
  %665 = vmatprep.subr.bf16.mxu0 0
  %666 = vmatpush2.bf16.msra.mxu0 0
  %667 = vmatprep.subr.bf16.mxu0 0
  %668 = vmatpush2.bf16.msra.mxu0 0
  %669 = vmatprep.subr.bf16.mxu0 0
  %670 = vmatpush2.bf16.msra.mxu0 0
  %671 = vmatprep.mubr.bf16.mxu0 0
  %672 = vmatmul.mubr.bf16.gmra.mxu0 %v637
  %v673 = vpop.f32.mrf.mxu0
  %v674 = vadd.f32 0.0, %v673
  %v675 = vpop.f32.mrf.mxu0
  %v676 = vpop.f32.mrf.mxu0
  %v677 = vadd.f32 0.0, %v676
  %v678 = vpop.f32.mrf.mxu0
  %679 = vdwg.mxu0
  %v680 = vpack.c.bf16 %v677, %v674
  %v682 = vunpack.c.l.b16 %v680
  %v683 = vunpack.c.h.b16 %v680
  %v684 = vpack.c.b16 %v682, %v682
  %v685 = vpack.c.b16 %v683, %v683
  %688 = vst [vmem:[%s5] sm:$0xf] %v684
  %689 = vst [vmem:[%s5 + $0x4] sm:$0xf] %v685
  // Predicated region
  $region22: #{gat_forward.4} parent=0 // pred_check
    _
  $region23: #{gat_forward.4} parent=0 // pred_check_branch
    %691 = sbr.rel (0) target = $region25
  $region24: #{gat_forward.4} parent=0 // pred_region
    _
  $region25: #{gat_forward.4} parent=0 // pred_fallthru
    _
  // Predicated region
  $region26: #{gat_forward.4} parent=0 // pred_check
    _
  $region27: #{gat_forward.4} parent=0 // pred_check_branch
    %693 = sbr.rel (0) target = $region29
  $region28: #{gat_forward.4} parent=0 // pred_region
    _
  $region29: #{gat_forward.4} parent=0 // pred_fallthru
    _

// kernel: gat_forward.5
$region0: #{gat_forward.5}
  #allocation0 [shape = 'u32[]', space=smem, size = 0x4, offset = 0x4, fixed_abs, tag = 'smem constant byte address 0x4 - core index']
  #allocation1 [shape = 'u32[144,128]{1,0:T(1,128)}', space=vmem, size = 0x12000, scoped, tag = 'internal scratch']
  %s0 = inlined_call_operand.vmem [shape: bf16[16,128], index: 0, kind: input, shape index: {}]
  %s1 = inlined_call_operand.vmem [shape: s8[16,16], index: 1, kind: input, shape index: {}]
  %s2 = inlined_call_operand.vmem [shape: bf16[128,4], index: 2, kind: input, shape index: {}]
  %s3 = inlined_call_operand.vmem [shape: bf16[4,128], index: 3, kind: input, shape index: {}]
  %s4 = inlined_call_operand.hbm [shape: f32[16,32], index: 4, kind: output, shape index: {}]
  %s5 = sld [smem:[#allocation0]]
  $region26: #{gat_forward.5} parent=0
    _
  %s7 = ssub.s32 1, %s5
  %s8 = scalar_select 0, %s7, %s5
  $region1: #{gat_forward.5} parent=0
    #allocation2 [shape = 'u8[8192]{0}', space=vmem, size = 0x2000, scoped, tag = 'output window, operand 0, single buffered']
    #allocation3 [shape = 's32[1]{0}', space=sflag, size = 0x4, scoped, tag = 'scoped memory for gat_forward.5']
    %9 = vsyncpa [#allocation3], 0
    // Predicated region
    $region2: #{gat_forward.5} parent=1 // pred_check
      _
    $region3: #{gat_forward.5} parent=1 // pred_check_branch
      %11 = sbr.rel (0) target = $region5
    $region4: #{gat_forward.5} parent=1 // pred_region
      _
    $region5: #{gat_forward.5} parent=1 // pred_fallthru
      _
    // Predicated region
    $region6: #{gat_forward.5} parent=1 // pred_check
      _
    $region7: #{gat_forward.5} parent=1 // pred_check_branch
      %13 = sbr.rel (0) target = $region9
    $region8: #{gat_forward.5} parent=1 // pred_region
      _
    $region9: #{gat_forward.5} parent=1 // pred_fallthru
      _
    // Predicated region
    $region10: #{gat_forward.5} parent=1 // pred_check
      _
    $region11: #{gat_forward.5} parent=1 // pred_check_branch
      %15 = sbr.rel (0) target = $region13
    $region12: #{gat_forward.5} parent=1 // pred_region
      _
    $region13: #{gat_forward.5} parent=1 // pred_fallthru
      _
    // Predicated region
    $region14: #{gat_forward.5} parent=1 // pred_check
      _
    $region15: #{gat_forward.5} parent=1 // pred_check_branch
      %17 = sbr.rel (0) target = $region17
    $region16: #{gat_forward.5} parent=1 // pred_region
      _
    $region17: #{gat_forward.5} parent=1 // pred_fallthru
      _
    %s19 = smul.u32 0, 16
    %v20 = vld [vmem:[%s0] sm:$0xf]
    %v21 = vld [vmem:[%s0 + $0x4] sm:$0xf]
    %s22 = sshra.s32 %s19, 3
    %s23 = sand.u32 %s19, 7
    %s24 = smul.addr %s22, 4
    %s25 = scalar_lea.vmem %s0, %s24
    %v26 = vld [vmem:[%s25] sm:$0xf]
    %v27 = vld [vmem:[%s25 + $0x4] sm:$0xf]
    %v28 = vld [vmem:[%s1] sm:$0x3]
    %v29 = vld [vmem:[%s1 + $0x2] sm:$0x3]
    %v30 = vunpack.c.0.s8 %v28
    %v31 = vunpack.c.0.s8 %v29
    %v32 = vcvt.s32.f32 %v30
    %v33 = vcvt.s32.f32 %v31
    %v34 = vsub.f32 1.0, %v32
    %v35 = vsub.f32 1.0, %v33
    %v36 = vmul.f32 %v34, -9e+15
    %v37 = vmul.f32 %v35, -9e+15
    %v38 = vld [vmem:[%s2] sm:$0xf]
    %v39 = vld [vmem:[%s2 + $0x4] sm:$0xf]
    %v40 = vld [vmem:[%s2 + $0x8] sm:$0xf]
    %v41 = vld [vmem:[%s2 + $0xc] sm:$0xf]
    %v42 = vld [vmem:[%s2 + $0x10] sm:$0xf]
    %v43 = vld [vmem:[%s2 + $0x14] sm:$0xf]
    %v44 = vld [vmem:[%s2 + $0x18] sm:$0xf]
    %v45 = vld [vmem:[%s2 + $0x1c] sm:$0xf]
    %v46 = vld [vmem:[%s2 + $0x20] sm:$0xf]
    %v47 = vld [vmem:[%s2 + $0x24] sm:$0xf]
    %v48 = vld [vmem:[%s2 + $0x28] sm:$0xf]
    %v49 = vld [vmem:[%s2 + $0x2c] sm:$0xf]
    %v50 = vld [vmem:[%s2 + $0x30] sm:$0xf]
    %v51 = vld [vmem:[%s2 + $0x34] sm:$0xf]
    %v52 = vld [vmem:[%s2 + $0x38] sm:$0xf]
    %v53 = vld [vmem:[%s2 + $0x3c] sm:$0xf]
    %v54 = vld [vmem:[%s3] sm:$0x3]
    %v57 = vunpack.c.l.b16 %v26
    %v58 = vunpack.c.l.b16 %v27
    %v59 = vpack.c.b16 %v58, %v57
    %v77 = vunpack.c.l.b16 %v38
    %v78 = vunpack.c.l.b16 %v39
    %v79 = vunpack.c.l.b16 %v40
    %v80 = vunpack.c.l.b16 %v41
    %v81 = vunpack.c.l.b16 %v42
    %v82 = vunpack.c.l.b16 %v43
    %v83 = vunpack.c.l.b16 %v44
    %v84 = vunpack.c.l.b16 %v45
    %v85 = vunpack.c.l.b16 %v46
    %v86 = vunpack.c.l.b16 %v47
    %v87 = vunpack.c.l.b16 %v48
    %v88 = vunpack.c.l.b16 %v49
    %v89 = vunpack.c.l.b16 %v50
    %v90 = vunpack.c.l.b16 %v51
    %v91 = vunpack.c.l.b16 %v52
    %v92 = vunpack.c.l.b16 %v53
    %v93 = vpack.c.b16 %v78, %v77
    %v94 = vpack.c.b16 %v80, %v79
    %v95 = vpack.c.b16 %v82, %v81
    %v96 = vpack.c.b16 %v84, %v83
    %v97 = vpack.c.b16 %v86, %v85
    %v98 = vpack.c.b16 %v88, %v87
    %v99 = vpack.c.b16 %v90, %v89
    %v100 = vpack.c.b16 %v92, %v91
    %109 = vmatprep.subr.bf16.mxu0 0
    %110 = vmatpush1.bf16.msra.mxu0 %v100
    %111 = vmatprep.subr.bf16.mxu0 0
    %112 = vmatpush1.bf16.msra.mxu0 %v99
    %113 = vmatprep.subr.bf16.mxu0 0
    %114 = vmatpush1.bf16.msra.mxu0 %v98
    %115 = vmatprep.subr.bf16.mxu0 0
    %116 = vmatpush1.bf16.msra.mxu0 %v97
    %117 = vmatprep.subr.bf16.mxu0 0
    %118 = vmatpush1.bf16.msra.mxu0 %v96
    %119 = vmatprep.subr.bf16.mxu0 0
    %120 = vmatpush1.bf16.msra.mxu0 %v95
    %121 = vmatprep.subr.bf16.mxu0 0
    %122 = vmatpush1.bf16.msra.mxu0 %v94
    %123 = vmatprep.subr.bf16.mxu0 0
    %124 = vmatpush1.bf16.msra.mxu0 %v93
    %125 = vmatprep.subr.bf16.mxu0 0
    %126 = vmatpush2.bf16.msra.mxu0 0
    %127 = vmatprep.subr.bf16.mxu0 0
    %128 = vmatpush2.bf16.msra.mxu0 0
    %129 = vmatprep.subr.bf16.mxu0 0
    %130 = vmatpush2.bf16.msra.mxu0 0
    %131 = vmatprep.subr.bf16.mxu0 0
    %132 = vmatpush2.bf16.msra.mxu0 0
    %133 = vmatprep.subr.bf16.mxu0 0
    %134 = vmatpush2.bf16.msra.mxu0 0
    %135 = vmatprep.subr.bf16.mxu0 0
    %136 = vmatpush2.bf16.msra.mxu0 0
    %137 = vmatprep.subr.bf16.mxu0 0
    %138 = vmatpush2.bf16.msra.mxu0 0
    %139 = vmatprep.subr.bf16.mxu0 0
    %140 = vmatpush2.bf16.msra.mxu0 0
    %141 = vmatprep.mubr.bf16.mxu0 0
    %142 = vmatmul.mubr.bf16.gmra.mxu0 %v59
    %v143 = vpop.f32.mrf.mxu0
    %v144 = vadd.f32 0.0, %v143
    %v145 = vpop.f32.mrf.mxu0
    %v146 = vpop.f32.mrf.mxu0
    %v147 = vadd.f32 0.0, %v146
    %v148 = vpop.f32.mrf.mxu0
    %149 = vdwg.mxu0
    %v152 = vunpack.c.l.b16 %v20
    %v153 = vunpack.c.l.b16 %v21
    %v154 = vpack.c.b16 %v153, %v152
    %156 = vmatprep.subr.bf16.mxu0 0
    %157 = vmatpush1.bf16.xpose.msra.mxu0 0
    %158 = vmatprep.subr.bf16.mxu0 0
    %159 = vmatpush1.bf16.xpose.msra.mxu0 0
    %160 = vmatprep.subr.bf16.mxu0 0
    %161 = vmatpush1.bf16.xpose.msra.mxu0 0
    %162 = vmatprep.subr.bf16.mxu0 0
    %163 = vmatpush1.bf16.xpose.msra.mxu0 0
    %164 = vmatprep.subr.bf16.mxu0 0
    %165 = vmatpush1.bf16.xpose.msra.mxu0 0
    %166 = vmatprep.subr.bf16.mxu0 0
    %167 = vmatpush1.bf16.xpose.msra.mxu0 0
    %168 = vmatprep.subr.bf16.mxu0 0
    %169 = vmatpush1.bf16.xpose.msra.mxu0 0
    %170 = vmatprep.subr.bf16.mxu0 0
    %171 = vmatpush1.bf16.xpose.msra.mxu0 %v154
    %172 = vmatprep.subr.bf16.mxu0 0
    %173 = vmatpush2.bf16.xpose.msra.mxu0 0
    %174 = vmatprep.subr.bf16.mxu0 0
    %175 = vmatpush2.bf16.xpose.msra.mxu0 0
    %176 = vmatprep.subr.bf16.mxu0 0
    %177 = vmatpush2.bf16.xpose.msra.mxu0 0
    %178 = vmatprep.subr.bf16.mxu0 0
    %179 = vmatpush2.bf16.xpose.msra.mxu0 0
    %180 = vmatprep.subr.bf16.mxu0 0
    %181 = vmatpush2.bf16.xpose.msra.mxu0 0
    %182 = vmatprep.subr.bf16.mxu0 0
    %183 = vmatpush2.bf16.xpose.msra.mxu0 0
    %184 = vmatprep.subr.bf16.mxu0 0
    %185 = vmatpush2.bf16.xpose.msra.mxu0 0
    %186 = vmatprep.subr.bf16.mxu0 0
    %187 = vmatpush2.bf16.xpose.msra.mxu0 0
    %188 = vmatprep.mubr.bf16.mxu0 0
    %189 = vmatmul.mubr.bf16.gmra.mxu0 %v54
    %v190 = vpop.f32.mrf.mxu0
    %v191 = vadd.f32 0.0, %v190
    %v192 = vpop.f32.mrf.mxu0
    %v193 = vpop.f32.mrf.mxu0
    %v194 = vpop.f32.mrf.mxu0
    %195 = vdwg.mxu0
    %197 = vset.pattern.permute.xlu0 0
    %198 = vperm.xlu0 %197, %v144
    %v199 = vpop.permute.xlu0 %198
    %202 = vset.pattern.permute.xlu0 0
    %203 = vperm.xlu0 %202, %v147
    %v204 = vpop.permute.xlu0 %203
    %v206 = vlaneseq
    %v207 = vshrl.u32 %v206, 7
    %v208 = vsub.s32 0, %v207
    %v209 = vrot.slane %v191, %v208
    %v210 = vadd.f32 %v199, %v209
    %v211 = vadd.f32 %v204, %v209
    %v212 = vmul.f32 %v210, 0.2
    %v213 = vmul.f32 %v211, 0.2
    %v214 = vmax.f32 %v210, %v212
    %v215 = vmax.f32 %v211, %v213
    %v216 = vadd.f32 %v214, %v36
    %v217 = vadd.f32 %v215, %v37
    %vm218 = vcmask 130048
    %v219 = vsel %vm218, %v216, -inf
    %220 = vmax.xlane.f32.xlu0 %v219
    %v221 = vpop.xlane.xlu0 %220
    %v222 = vsel %vm218, %v217, -inf
    %223 = vmax.xlane.f32.xlu0 %v222
    %v224 = vpop.xlane.xlu0 %223
    %v225 = vsub.f32 %v216, %v221
    %v226 = vsub.f32 %v217, %v224
    %v227 = vmul.f32 %v225, 1.442695
    %v228 = vpow.pop %v227
    %v229 = vmul.f32 %v226, 1.442695
    %v230 = vpow.pop %v229
    %v231 = vsel %vm218, %v228, 0.0
    %232 = vadd.xlane.f32.xlu0 %v231
    %v233 = vpop.xlane.xlu0 %232
    %v234 = vsel %vm218, %v230, 0.0
    %235 = vadd.xlane.f32.xlu0 %v234
    %v236 = vpop.xlane.xlu0 %235
    %v237 = vpack.c.bf16 %v230, %v228
    %v239 = vsel %vm218, %v237, 0
    %241 = vmatprep.subr.bf16.mxu0 0
    %242 = vmatpush1.bf16.msra.mxu0 0
    %243 = vmatprep.subr.bf16.mxu0 0
    %244 = vmatpush1.bf16.msra.mxu0 0
    %245 = vmatprep.subr.bf16.mxu0 0
    %246 = vmatpush1.bf16.msra.mxu0 0
    %247 = vmatprep.subr.bf16.mxu0 0
    %248 = vmatpush1.bf16.msra.mxu0 0
    %249 = vmatprep.subr.bf16.mxu0 0
    %250 = vmatpush1.bf16.msra.mxu0 0
    %251 = vmatprep.subr.bf16.mxu0 0
    %252 = vmatpush1.bf16.msra.mxu0 0
    %253 = vmatprep.subr.bf16.mxu0 0
    %254 = vmatpush1.bf16.msra.mxu0 0
    %255 = vmatprep.subr.bf16.mxu0 0
    %256 = vmatpush1.bf16.msra.mxu0 %v154
    %257 = vmatprep.subr.bf16.mxu0 0
    %258 = vmatpush2.bf16.msra.mxu0 0
    %259 = vmatprep.subr.bf16.mxu0 0
    %260 = vmatpush2.bf16.msra.mxu0 0
    %261 = vmatprep.subr.bf16.mxu0 0
    %262 = vmatpush2.bf16.msra.mxu0 0
    %263 = vmatprep.subr.bf16.mxu0 0
    %264 = vmatpush2.bf16.msra.mxu0 0
    %265 = vmatprep.subr.bf16.mxu0 0
    %266 = vmatpush2.bf16.msra.mxu0 0
    %267 = vmatprep.subr.bf16.mxu0 0
    %268 = vmatpush2.bf16.msra.mxu0 0
    %269 = vmatprep.subr.bf16.mxu0 0
    %270 = vmatpush2.bf16.msra.mxu0 0
    %271 = vmatprep.subr.bf16.mxu0 0
    %272 = vmatpush2.bf16.msra.mxu0 0
    %273 = vmatprep.mubr.bf16.mxu0 0
    %274 = vmatmul.mubr.bf16.gmra.mxu0 %v239
    %v275 = vpop.f32.mrf.mxu0
    %v276 = vadd.f32 0.0, %v275
    %v277 = vpop.f32.mrf.mxu0
    %v278 = vpop.f32.mrf.mxu0
    %v279 = vadd.f32 0.0, %v278
    %v280 = vpop.f32.mrf.mxu0
    %281 = vdwg.mxu0
    %v282 = vrcp.pop %v233
    %v283 = vrcp.pop %v236
    %v284 = vmul.f32 %v276, %v282
    %v285 = vmul.f32 %v279, %v283
    %vm286 = vcmp.gt.f32.partialorder %v284, 0.0
    %vm287 = vcmp.gt.f32.partialorder %v285, 0.0
    %v288 = vmul.f32 %v284, 1.442695
    %v289 = vpow.pop %v288
    %v290 = vmul.f32 %v285, 1.442695
    %v291 = vpow.pop %v290
    %v292 = vsub.f32 %v289, 1.0
    %v293 = vsub.f32 %v291, 1.0
    %v294 = vsel %vm286, %v284, %v292
    %v295 = vsel %vm287, %v285, %v293
    %v296 = vadd.f32 %v294, 0.0
    %v297 = vadd.f32 %v295, 0.0
    %298 = vset.pattern.permute.xlu0 1
    %299 = vperm.xlu0 %298, %v144
    %v300 = vpop.permute.xlu0 %299
    %302 = vset.pattern.permute.xlu0 1
    %303 = vperm.xlu0 %302, %v147
    %v304 = vpop.permute.xlu0 %303
    %v306 = vlaneseq
    %v307 = vshrl.u32 %v306, 7
    %v308 = vsub.s32 1, %v307
    %v309 = vrot.slane %v191, %v308
    %v310 = vadd.f32 %v300, %v309
    %v311 = vadd.f32 %v304, %v309
    %v312 = vmul.f32 %v310, 0.2
    %v313 = vmul.f32 %v311, 0.2
    %v314 = vmax.f32 %v310, %v312
    %v315 = vmax.f32 %v311, %v313
    %v316 = vadd.f32 %v314, %v36
    %v317 = vadd.f32 %v315, %v37
    %v318 = vsel %vm218, %v316, -inf
    %319 = vmax.xlane.f32.xlu0 %v318
    %v320 = vpop.xlane.xlu0 %319
    %v321 = vsel %vm218, %v317, -inf
    %322 = vmax.xlane.f32.xlu0 %v321
    %v323 = vpop.xlane.xlu0 %322
    %v324 = vsub.f32 %v316, %v320
    %v325 = vsub.f32 %v317, %v323
    %v326 = vmul.f32 %v324, 1.442695
    %v327 = vpow.pop %v326
    %v328 = vmul.f32 %v325, 1.442695
    %v329 = vpow.pop %v328
    %v330 = vsel %vm218, %v327, 0.0
    %331 = vadd.xlane.f32.xlu0 %v330
    %v332 = vpop.xlane.xlu0 %331
    %v333 = vsel %vm218, %v329, 0.0
    %334 = vadd.xlane.f32.xlu0 %v333
    %v335 = vpop.xlane.xlu0 %334
    %v336 = vpack.c.bf16 %v329, %v327
    %337 = vrot.lane.b32.xlu0 %v154, 96
    %v338 = vpop.permute.xlu0 %337
    %v341 = vsel %vm218, %v336, 0
    %343 = vmatprep.subr.bf16.mxu0 0
    %344 = vmatpush1.bf16.msra.mxu0 0
    %345 = vmatprep.subr.bf16.mxu0 0
    %346 = vmatpush1.bf16.msra.mxu0 0
    %347 = vmatprep.subr.bf16.mxu0 0
    %348 = vmatpush1.bf16.msra.mxu0 0
    %349 = vmatprep.subr.bf16.mxu0 0
    %350 = vmatpush1.bf16.msra.mxu0 0
    %351 = vmatprep.subr.bf16.mxu0 0
    %352 = vmatpush1.bf16.msra.mxu0 0
    %353 = vmatprep.subr.bf16.mxu0 0
    %354 = vmatpush1.bf16.msra.mxu0 0
    %355 = vmatprep.subr.bf16.mxu0 0
    %356 = vmatpush1.bf16.msra.mxu0 0
    %357 = vmatprep.subr.bf16.mxu0 0
    %358 = vmatpush1.bf16.msra.mxu0 %v338
    %359 = vmatprep.subr.bf16.mxu0 0
    %360 = vmatpush2.bf16.msra.mxu0 0
    %361 = vmatprep.subr.bf16.mxu0 0
    %362 = vmatpush2.bf16.msra.mxu0 0
    %363 = vmatprep.subr.bf16.mxu0 0
    %364 = vmatpush2.bf16.msra.mxu0 0
    %365 = vmatprep.subr.bf16.mxu0 0
    %366 = vmatpush2.bf16.msra.mxu0 0
    %367 = vmatprep.subr.bf16.mxu0 0
    %368 = vmatpush2.bf16.msra.mxu0 0
    %369 = vmatprep.subr.bf16.mxu0 0
    %370 = vmatpush2.bf16.msra.mxu0 0
    %371 = vmatprep.subr.bf16.mxu0 0
    %372 = vmatpush2.bf16.msra.mxu0 0
    %373 = vmatprep.subr.bf16.mxu0 0
    %374 = vmatpush2.bf16.msra.mxu0 0
    %375 = vmatprep.mubr.bf16.mxu0 0
    %376 = vmatmul.mubr.bf16.gmra.mxu0 %v341
    %v377 = vpop.f32.mrf.mxu0
    %v378 = vadd.f32 0.0, %v377
    %v379 = vpop.f32.mrf.mxu0
    %v380 = vpop.f32.mrf.mxu0
    %v381 = vadd.f32 0.0, %v380
    %v382 = vpop.f32.mrf.mxu0
    %383 = vdwg.mxu0
    %v384 = vrcp.pop %v332
    %v385 = vrcp.pop %v335
    %v386 = vmul.f32 %v378, %v384
    %v387 = vmul.f32 %v381, %v385
    %vm388 = vcmp.gt.f32.partialorder %v386, 0.0
    %vm389 = vcmp.gt.f32.partialorder %v387, 0.0
    %v390 = vmul.f32 %v386, 1.442695
    %v391 = vpow.pop %v390
    %v392 = vmul.f32 %v387, 1.442695
    %v393 = vpow.pop %v392
    %v394 = vsub.f32 %v391, 1.0
    %v395 = vsub.f32 %v393, 1.0
    %v396 = vsel %vm388, %v386, %v394
    %v397 = vsel %vm389, %v387, %v395
    %v398 = vadd.f32 %v296, %v396
    %v399 = vadd.f32 %v297, %v397
    %400 = vset.pattern.permute.xlu0 2
    %401 = vperm.xlu0 %400, %v144
    %v402 = vpop.permute.xlu0 %401
    %404 = vset.pattern.permute.xlu0 2
    %405 = vperm.xlu0 %404, %v147
    %v406 = vpop.permute.xlu0 %405
    %v408 = vlaneseq
    %v409 = vshrl.u32 %v408, 7
    %v410 = vsub.s32 2, %v409
    %v411 = vrot.slane %v191, %v410
    %v412 = vadd.f32 %v402, %v411
    %v413 = vadd.f32 %v406, %v411
    %v414 = vmul.f32 %v412, 0.2
    %v415 = vmul.f32 %v413, 0.2
    %v416 = vmax.f32 %v412, %v414
    %v417 = vmax.f32 %v413, %v415
    %v418 = vadd.f32 %v416, %v36
    %v419 = vadd.f32 %v417, %v37
    %v420 = vsel %vm218, %v418, -inf
    %421 = vmax.xlane.f32.xlu0 %v420
    %v422 = vpop.xlane.xlu0 %421
    %v423 = vsel %vm218, %v419, -inf
    %424 = vmax.xlane.f32.xlu0 %v423
    %v425 = vpop.xlane.xlu0 %424
    %v426 = vsub.f32 %v418, %v422
    %v427 = vsub.f32 %v419, %v425
    %v428 = vmul.f32 %v426, 1.442695
    %v429 = vpow.pop %v428
    %v430 = vmul.f32 %v427, 1.442695
    %v431 = vpow.pop %v430
    %v432 = vsel %vm218, %v429, 0.0
    %433 = vadd.xlane.f32.xlu0 %v432
    %v434 = vpop.xlane.xlu0 %433
    %v435 = vsel %vm218, %v431, 0.0
    %436 = vadd.xlane.f32.xlu0 %v435
    %v437 = vpop.xlane.xlu0 %436
    %v438 = vpack.c.bf16 %v431, %v429
    %439 = vrot.lane.b32.xlu0 %v154, 64
    %v440 = vpop.permute.xlu0 %439
    %v443 = vsel %vm218, %v438, 0
    %445 = vmatprep.subr.bf16.mxu0 0
    %446 = vmatpush1.bf16.msra.mxu0 0
    %447 = vmatprep.subr.bf16.mxu0 0
    %448 = vmatpush1.bf16.msra.mxu0 0
    %449 = vmatprep.subr.bf16.mxu0 0
    %450 = vmatpush1.bf16.msra.mxu0 0
    %451 = vmatprep.subr.bf16.mxu0 0
    %452 = vmatpush1.bf16.msra.mxu0 0
    %453 = vmatprep.subr.bf16.mxu0 0
    %454 = vmatpush1.bf16.msra.mxu0 0
    %455 = vmatprep.subr.bf16.mxu0 0
    %456 = vmatpush1.bf16.msra.mxu0 0
    %457 = vmatprep.subr.bf16.mxu0 0
    %458 = vmatpush1.bf16.msra.mxu0 0
    %459 = vmatprep.subr.bf16.mxu0 0
    %460 = vmatpush1.bf16.msra.mxu0 %v440
    %461 = vmatprep.subr.bf16.mxu0 0
    %462 = vmatpush2.bf16.msra.mxu0 0
    %463 = vmatprep.subr.bf16.mxu0 0
    %464 = vmatpush2.bf16.msra.mxu0 0
    %465 = vmatprep.subr.bf16.mxu0 0
    %466 = vmatpush2.bf16.msra.mxu0 0
    %467 = vmatprep.subr.bf16.mxu0 0
    %468 = vmatpush2.bf16.msra.mxu0 0
    %469 = vmatprep.subr.bf16.mxu0 0
    %470 = vmatpush2.bf16.msra.mxu0 0
    %471 = vmatprep.subr.bf16.mxu0 0
    %472 = vmatpush2.bf16.msra.mxu0 0
    %473 = vmatprep.subr.bf16.mxu0 0
    %474 = vmatpush2.bf16.msra.mxu0 0
    %475 = vmatprep.subr.bf16.mxu0 0
    %476 = vmatpush2.bf16.msra.mxu0 0
    %477 = vmatprep.mubr.bf16.mxu0 0
    %478 = vmatmul.mubr.bf16.gmra.mxu0 %v443
    %v479 = vpop.f32.mrf.mxu0
    %v480 = vadd.f32 0.0, %v479
    %v481 = vpop.f32.mrf.mxu0
    %v482 = vpop.f32.mrf.mxu0
    %v483 = vadd.f32 0.0, %v482
    %v484 = vpop.f32.mrf.mxu0
    %485 = vdwg.mxu0
    %v486 = vrcp.pop %v434
    %v487 = vrcp.pop %v437
    %v488 = vmul.f32 %v480, %v486
    %v489 = vmul.f32 %v483, %v487
    %vm490 = vcmp.gt.f32.partialorder %v488, 0.0
    %vm491 = vcmp.gt.f32.partialorder %v489, 0.0
    %v492 = vmul.f32 %v488, 1.442695
    %v493 = vpow.pop %v492
    %v494 = vmul.f32 %v489, 1.442695
    %v495 = vpow.pop %v494
    %v496 = vsub.f32 %v493, 1.0
    %v497 = vsub.f32 %v495, 1.0
    %v498 = vsel %vm490, %v488, %v496
    %v499 = vsel %vm491, %v489, %v497
    %v500 = vadd.f32 %v398, %v498
    %v501 = vadd.f32 %v399, %v499
    %502 = vset.pattern.permute.xlu0 3
    %503 = vperm.xlu0 %502, %v144
    %v504 = vpop.permute.xlu0 %503
    %506 = vset.pattern.permute.xlu0 3
    %507 = vperm.xlu0 %506, %v147
    %v508 = vpop.permute.xlu0 %507
    %v510 = vlaneseq
    %v511 = vshrl.u32 %v510, 7
    %v512 = vsub.s32 3, %v511
    %v513 = vrot.slane %v191, %v512
    %v514 = vadd.f32 %v504, %v513
    %v515 = vadd.f32 %v508, %v513
    %v516 = vmul.f32 %v514, 0.2
    %v517 = vmul.f32 %v515, 0.2
    %v518 = vmax.f32 %v514, %v516
    %v519 = vmax.f32 %v515, %v517
    %v520 = vadd.f32 %v518, %v36
    %v521 = vadd.f32 %v519, %v37
    %v522 = vsel %vm218, %v520, -inf
    %523 = vmax.xlane.f32.xlu0 %v522
    %v524 = vpop.xlane.xlu0 %523
    %v525 = vsel %vm218, %v521, -inf
    %526 = vmax.xlane.f32.xlu0 %v525
    %v527 = vpop.xlane.xlu0 %526
    %v528 = vsub.f32 %v520, %v524
    %v529 = vsub.f32 %v521, %v527
    %v530 = vmul.f32 %v528, 1.442695
    %v531 = vpow.pop %v530
    %v532 = vmul.f32 %v529, 1.442695
    %v533 = vpow.pop %v532
    %v534 = vsel %vm218, %v531, 0.0
    %535 = vadd.xlane.f32.xlu0 %v534
    %v536 = vpop.xlane.xlu0 %535
    %v537 = vsel %vm218, %v533, 0.0
    %538 = vadd.xlane.f32.xlu0 %v537
    %v539 = vpop.xlane.xlu0 %538
    %v540 = vpack.c.bf16 %v533, %v531
    %541 = vrot.lane.b32.xlu0 %v154, 32
    %v542 = vpop.permute.xlu0 %541
    %v545 = vsel %vm218, %v540, 0
    %547 = vmatprep.subr.bf16.mxu0 0
    %548 = vmatpush1.bf16.msra.mxu0 0
    %549 = vmatprep.subr.bf16.mxu0 0
    %550 = vmatpush1.bf16.msra.mxu0 0
    %551 = vmatprep.subr.bf16.mxu0 0
    %552 = vmatpush1.bf16.msra.mxu0 0
    %553 = vmatprep.subr.bf16.mxu0 0
    %554 = vmatpush1.bf16.msra.mxu0 0
    %555 = vmatprep.subr.bf16.mxu0 0
    %556 = vmatpush1.bf16.msra.mxu0 0
    %557 = vmatprep.subr.bf16.mxu0 0
    %558 = vmatpush1.bf16.msra.mxu0 0
    %559 = vmatprep.subr.bf16.mxu0 0
    %560 = vmatpush1.bf16.msra.mxu0 0
    %561 = vmatprep.subr.bf16.mxu0 0
    %562 = vmatpush1.bf16.msra.mxu0 %v542
    %563 = vmatprep.subr.bf16.mxu0 0
    %564 = vmatpush2.bf16.msra.mxu0 0
    %565 = vmatprep.subr.bf16.mxu0 0
    %566 = vmatpush2.bf16.msra.mxu0 0
    %567 = vmatprep.subr.bf16.mxu0 0
    %568 = vmatpush2.bf16.msra.mxu0 0
    %569 = vmatprep.subr.bf16.mxu0 0
    %570 = vmatpush2.bf16.msra.mxu0 0
    %571 = vmatprep.subr.bf16.mxu0 0
    %572 = vmatpush2.bf16.msra.mxu0 0
    %573 = vmatprep.subr.bf16.mxu0 0
    %574 = vmatpush2.bf16.msra.mxu0 0
    %575 = vmatprep.subr.bf16.mxu0 0
    %576 = vmatpush2.bf16.msra.mxu0 0
    %577 = vmatprep.subr.bf16.mxu0 0
    %578 = vmatpush2.bf16.msra.mxu0 0
    %579 = vmatprep.mubr.bf16.mxu0 0
    %580 = vmatmul.mubr.bf16.gmra.mxu0 %v545
    %v581 = vpop.f32.mrf.mxu0
    %v582 = vadd.f32 0.0, %v581
    %v583 = vpop.f32.mrf.mxu0
    %v584 = vpop.f32.mrf.mxu0
    %v585 = vadd.f32 0.0, %v584
    %v586 = vpop.f32.mrf.mxu0
    %587 = vdwg.mxu0
    %v588 = vrcp.pop %v536
    %v589 = vrcp.pop %v539
    %v590 = vmul.f32 %v582, %v588
    %v591 = vmul.f32 %v585, %v589
    %vm592 = vcmp.gt.f32.partialorder %v590, 0.0
    %vm593 = vcmp.gt.f32.partialorder %v591, 0.0
    %v594 = vmul.f32 %v590, 1.442695
    %v595 = vpow.pop %v594
    %v596 = vmul.f32 %v591, 1.442695
    %v597 = vpow.pop %v596
    %v598 = vsub.f32 %v595, 1.0
    %v599 = vsub.f32 %v597, 1.0
    %v600 = vsel %vm592, %v590, %v598
    %v601 = vsel %vm593, %v591, %v599
    %v602 = vadd.f32 %v500, %v600
    %v603 = vadd.f32 %v501, %v601
    %v604 = vmul.f32 %v602, 0.25
    %v605 = vmul.f32 %v603, 0.25
    %vm606 = vcmp.gt.f32.partialorder %v604, 0.0
    %vm607 = vcmp.gt.f32.partialorder %v605, 0.0
    %v608 = vmul.f32 %v604, 1.442695
    %v609 = vpow.pop %v608
    %v610 = vmul.f32 %v605, 1.442695
    %v611 = vpow.pop %v610
    %v612 = vsub.f32 %v609, 1.0
    %v613 = vsub.f32 %v611, 1.0
    %v614 = vsel %vm606, %v604, %v612
    %v615 = vsel %vm607, %v605, %v613
    %vm616 = vcmask 261120
    %617 = vst.msk [vmem:[#allocation2] sm:$0xff] %vm616, %v614
    %618 = vst.msk [vmem:[#allocation2 + $0x8] sm:$0xff] %vm616, %v615
    // Predicated region
    $region18: #{gat_forward.5} parent=1 // pred_check
      _
    $region19: #{gat_forward.5} parent=1 // pred_check_branch
      %620 = sbr.rel (0) target = $region21
    $region20: #{gat_forward.5} parent=1 // pred_region
      %s622 = ssub.s32 256, 256
      %623 = vsyncadd [#allocation3], %s622
      %s624 = sshll.u32 [#allocation2], 4
      %s625 = int_to_ptr.vmem [resolvable:$true] %s624
      %630 = dma.vmem_to_hbm [thread:$0]  %s625, 256, %s4, [#allocation3], 128, 128, 8
    $region21: #{gat_forward.5} parent=1 // pred_fallthru
      _
    // Predicated region
    $region22: #{gat_forward.5} parent=1 // pred_check
      _
    $region23: #{gat_forward.5} parent=1 // pred_check_branch
      %632 = sbr.rel (0) target = $region25
    $region24: #{gat_forward.5} parent=1 // pred_region
      %633 = dma.done [#allocation3], 256
    $region25: #{gat_forward.5} parent=1 // pred_fallthru
      _
    %634 = vsyncpa [#allocation3], 1

</llo_original>
